<compile_context>
chip_gen: v6e
topology: v6e:2x2x1
jax: 0.10.0
libtpu: 0.0.40
codegen_flags: <defaults>
</compile_context>

<pallas_src>
import functools
import math

import jax
import jax.numpy as jnp
import numpy as np
from jax.experimental import pallas as pl
from jax.experimental.pallas import tpu as pltpu


# -----------------------------------------------------------------------------
# Pallas kernel: one batch element per program, channel-major (C on sublanes,
# T on lanes).  All weights are VMEM-resident (tiny at these shapes).
# -----------------------------------------------------------------------------
def _wavenet_kernel(idx_ref, embed_ref, dil_w_ref, dil_b_ref,
                    rs_w_ref, rs_b_ref, conv_out_ref, conv_end_ref,
                    out_ref, skip_ref, *, layers, dilation):
    f32 = jnp.float32
    mm = embed_ref.dtype                     # matmul-operand dtype (bf16 by default)
    R, V = embed_ref.shape                   # residual channels, vocab
    S, T = skip_ref.shape                    # skip channels, time
    d = dilation

    # ---- embedding: one-hot built in-kernel, one MXU matmul -----------------
    idx = idx_ref[0]                                                   # (1, T) int32
    onehot = (jax.lax.broadcasted_iota(jnp.int32, (V, T), 0) == idx).astype(mm)
    x = jnp.dot(embed_ref[...], onehot, preferred_element_type=f32)    # (R, T) f32

    # ---- causal time-shift operator (per batch element) ---------------------
    # (x @ shift_t)[:, t] = x[:, t - d], zero for t < d.  Built from iota, so
    # there is no HBM / O((B*T)^2) array, and the per-batch grid means it can
    # never leak across batch boundaries.
    # TODO(synk): for large T replace this T^2 matmul with
    # pltpu.roll(x, shift=d, axis=1) * (iota >= d) so it runs on XLU/VPU slots;
    # kept as a tiny MXU op here because T=16 fits in a single vreg.
    src = jax.lax.broadcasted_iota(jnp.int32, (T, T), 0)
    dst = jax.lax.broadcasted_iota(jnp.int32, (T, T), 1)
    shift_t = (src == dst - d).astype(mm)                              # (T, T)

    skip_ref[...] = jnp.zeros_like(skip_ref)                           # VMEM accumulator
    res_acts = jnp.zeros((R, T), f32)        # only read before write if layers == 1

    # Unrolled python loop is fine at layers=3; switch to lax.fori_loop
    # (unroll=True) once `layers` grows so vreg live ranges stay bounded.
    for layer in range(layers):
        x_prev = jnp.dot(x.astype(mm), shift_t, preferred_element_type=f32)    # (R, T)
        xx = jnp.concatenate([x_prev, x], axis=0).astype(mm)                   # (2R, T)

        # fused causal dilated conv (kernel_size=2): [W0^T | W1^T] @ [x_prev; x] + b
        # weights are pre-sliced to the first R output channels -- BOTH the tanh
        # and sigmoid gates read exactly that slice in the reference module.
        gate_in = (jnp.dot(dil_w_ref[layer], xx, preferred_element_type=f32)
                   + dil_b_ref[layer])                                          # (R, T)

        # tanh(g)*sigmoid(g) == (1-u)/(1+u^2) with u = exp(-g): 1 EUP exp
        # instead of tanh + sigmoid.  Clamp keeps u^2 finite in f32.
        u = jnp.exp(-jnp.clip(gate_in, -30.0, 30.0))
        act = (1.0 - u) / (1.0 + u * u)                                         # (R, T) f32

        # fused residual + skip 1x1 convs: rows [:R] residual, rows [R:] skip.
        rs = (jnp.dot(rs_w_ref[layer], act.astype(mm), preferred_element_type=f32)
              + rs_b_ref[layer])                                                # (R+S, T)
        if layer < layers - 1:
            res_acts = rs[:R, :]
        # last layer: res_acts stays stale (reference-module quirk); its rs rows
        # are zero-padded weights and are never read.
        x = res_acts + x
        skip_ref[...] += rs[R:, :]

    # ---- output head ---------------------------------------------------------
    h = jnp.maximum(skip_ref[...], 0.0)                                         # ReLU
    h = jnp.dot(conv_out_ref[...], h.astype(mm), preferred_element_type=f32)    # (O, T)
    h = jnp.maximum(h, 0.0)                                                     # ReLU
    o = jnp.dot(conv_end_ref[...], h.astype(mm), preferred_element_type=f32)    # (O, T)

    # softmax over channels (PyTorch dim=1); exact normalization so rows sum to 1.
    e = jnp.exp(o - jnp.max(o, axis=0, keepdims=True))
    probs = e / jnp.sum(e, axis=0, keepdims=True)
    out_ref[0] = probs                        # direct (B, O, T) layout, full block store
    # NOTE: the reference also computes output.argmax(dim=1) and discards it;
    # intentionally not reproduced since it does not affect the returned value.


# -----------------------------------------------------------------------------
# One-time parameter preparation: transpose to channel-major, slice the dilated
# weights to the first R output channels, fuse w0|w1 and res|skip, cast matmul
# weights to bf16 (biases stay f32 -- added after f32 accumulation).
# -----------------------------------------------------------------------------
def prepare_params(params, *, layers, residual_channels, skip_channels,
                   mm_dtype=jnp.bfloat16):
    f32 = jnp.float32
    R, S, L = residual_channels, skip_channels, layers
    w0t = jnp.transpose(params['dil_w0'][:, :, :R], (0, 2, 1))          # (L, R, R)
    w1t = jnp.transpose(params['dil_w1'][:, :, :R], (0, 2, 1))          # (L, R, R)
    res_wt = jnp.transpose(params['res_w'], (0, 2, 1))                  # (L-1, R, R)
    res_bt = jnp.transpose(params['res_b'], (0, 2, 1))                  # (L-1, R, 1)
    skip_wt = jnp.transpose(params['skip_w'], (0, 2, 1))                # (L, S, R)
    skip_bt = jnp.transpose(params['skip_b'], (0, 2, 1))                # (L, S, 1)
    # pad the (never-read) residual slot of the last layer with zeros so every
    # layer uses one fused (R+S, R) weight / (R+S, 1) bias
    res_wt = jnp.concatenate([res_wt, jnp.zeros((1, R, R), f32)], axis=0)   # (L, R, R)
    res_bt = jnp.concatenate([res_bt, jnp.zeros((1, R, 1), f32)], axis=0)   # (L, R, 1)
    return {
        'embed_t':    params['embed_w'].T.astype(mm_dtype),                       # (R, V)
        'dil_w':      jnp.concatenate([w0t, w1t], axis=2).astype(mm_dtype),       # (L, R, 2R)
        'dil_b':      jnp.transpose(params['dil_b'][:, :, :R], (0, 2, 1)).astype(f32),  # (L, R, 1)
        'rs_w':       jnp.concatenate([res_wt, skip_wt], axis=1).astype(mm_dtype),      # (L, R+S, R)
        'rs_b':       jnp.concatenate([res_bt, skip_bt], axis=1).astype(f32),           # (L, R+S, 1)
        'conv_out_t': params['conv_out_w'].T.astype(mm_dtype),                    # (O, S)
        'conv_end_t': params['conv_end_w'].T.astype(mm_dtype),                    # (O, O)
    }


# -----------------------------------------------------------------------------
# Wrapper: grid over batch ("parallel"), weights replicated across the grid.
# -----------------------------------------------------------------------------
def wavenet_forward(forward_input, prep, *, layers, dilation):
    a = forward_input[0]                               # (B, T) int
    B, T = a.shape
    O, S = prep['conv_out_t'].shape
    idx = a.reshape(B, 1, T).astype(jnp.int32)         # only the indices go to HBM

    kernel = functools.partial(_wavenet_kernel, layers=layers, dilation=dilation)

    weight_keys = ('embed_t', 'dil_w', 'dil_b', 'rs_w', 'rs_b',
                   'conv_out_t', 'conv_end_t')

    def rep(shape):   # grid-invariant operand: full array, constant block index
        return pl.BlockSpec(shape, lambda b, _n=len(shape): (0,) * _n)

    in_specs = [pl.BlockSpec((1, 1, T), lambda b: (b, 0, 0))]          # indices
    in_specs += [rep(prep[k].shape) for k in weight_keys]              # weights
    out_specs = pl.BlockSpec((1, O, T), lambda b: (b, 0, 0))           # lane-dense block

    # vmem limit sized from the actual resident blocks (x2 double-buffering
    # + headroom for compiler temporaries), clamped to sane bounds.
    block_bytes = (4 * T + 4 * O * T + 4 * S * T
                   + sum(int(np.prod(prep[k].shape)) * prep[k].dtype.itemsize
                         for k in weight_keys))
    vmem_limit = min(128 * 1024 * 1024,
                     max(16 * 1024 * 1024, 2 * block_bytes + (1 << 20)))

    out = pl.pallas_call(
        kernel,
        grid=(B,),
        in_specs=in_specs,
        out_specs=out_specs,
        out_shape=jax.ShapeDtypeStruct((B, O, T), jnp.float32),
        scratch_shapes=[pltpu.VMEM((S, T), jnp.float32)],              # skip accumulator
        compiler_params=pltpu.CompilerParams(
            dimension_semantics=("parallel",),      # megacore on v7x, harmless elsewhere
            vmem_limit_bytes=vmem_limit),
    )(idx, *(prep[k] for k in weight_keys))
    return out                                         # already (B, output_channels, T)


# -----------------------------------------------------------------------------
# Plain-JAX reference.  mm_dtype lets it mirror the kernel's matmul-operand
# precision (bf16) for a tight comparison; mm_dtype=float32 is the exact
# original-module semantics.
# -----------------------------------------------------------------------------
def wavenet_reference(forward_input, params, *, layers, dilation,
                      residual_channels, vocab, mm_dtype=jnp.float32):
    f32 = jnp.float32

    def mm(a, b):
        return jnp.dot(a.astype(mm_dtype), b.astype(mm_dtype),
                       preferred_element_type=f32)

    a = forward_input[0]
    x = mm(jax.nn.one_hot(a, vocab, dtype=f32), params['embed_w'])     # (B, T, R)
    B, T, R = x.shape
    d = dilation
    res_acts = jnp.zeros_like(x)
    skip_out = None
    for layer in range(layers):
        x_prev = jnp.concatenate(
            [jnp.zeros((B, d, R), f32), x[:, :T - d, :]], axis=1)
        in_act = (mm(x_prev, params['dil_w0'][layer])
                  + mm(x, params['dil_w1'][layer])
                  + params['dil_b'][layer])
        gate_in = in_act[:, :, :R]
        act = jnp.tanh(gate_in) * jax.nn.sigmoid(gate_in)
        if layer < layers - 1:
            res_acts = mm(act, params['res_w'][layer]) + params['res_b'][layer]
        x = res_acts + x
        sk = mm(act, params['skip_w'][layer]) + params['skip_b'][layer]
        skip_out = sk if layer == 0 else skip_out + sk
    out = jnp.maximum(skip_out, 0.0)
    out = jnp.maximum(mm(out, params['conv_out_w']), 0.0)
    out = mm(out, params['conv_end_w'])
    out = jax.nn.softmax(out, axis=-1)
    return jnp.transpose(out, (0, 2, 1))


# -----------------------------------------------------------------------------
# Deterministic parameter initialization (xavier-uniform-like, synthetic)
# -----------------------------------------------------------------------------
def _xavier(key, shape, gain):
    fan_in, fan_out = shape[-2], shape[-1]
    bound = gain * math.sqrt(6.0 / (fan_in + fan_out))
    return jax.random.uniform(key, shape, jnp.float32, -bound, bound)


def init_params(key, *, vocab, layers, residual_channels, skip_channels,
                output_channels, cond_channels, upsample_window):
    R, S, O, L = residual_channels, skip_channels, output_channels, layers
    g_tanh, g_relu, g_lin = 5.0 / 3.0, math.sqrt(2.0), 1.0
    keys = jax.random.split(key, 16)
    params = {
        'embed_w':     jax.random.normal(keys[0], (vocab, R), jnp.float32),
        'dil_w0':      _xavier(keys[1], (L, R, 2 * R), g_tanh),
        'dil_w1':      _xavier(keys[2], (L, R, 2 * R), g_tanh),
        'dil_b':       0.05 * jax.random.normal(keys[3], (L, 1, 2 * R), jnp.float32),
        'res_w':       _xavier(keys[4], (L - 1, R, R), g_lin),
        'res_b':       0.05 * jax.random.normal(keys[5], (L - 1, 1, R), jnp.float32),
        'skip_w':      _xavier(keys[6], (L, R, S), g_relu),
        'skip_b':      0.05 * jax.random.normal(keys[7], (L, 1, S), jnp.float32),
        'conv_out_w':  _xavier(keys[8], (S, O), g_relu),
        'conv_end_w':  _xavier(keys[9], (O, O), g_lin),
        # unused in forward() -- kept only for shape fidelity with __init__:
        'cond_w':      _xavier(keys[10], (cond_channels, 2 * R * L), g_tanh),
        'cond_b':      0.05 * jax.random.normal(keys[11], (1, 2 * R * L), jnp.float32),
        'upsample_w':  _xavier(keys[12], (cond_channels * upsample_window,
                                          cond_channels), g_lin),
        'upsample_b':  jnp.zeros((cond_channels,), jnp.float32),
    }
    return params


if __name__ == "__main__":
    # Small configuration consistent with the module's __init__.
    input_channels = 8        # vocab size of the embedding
    layers = 3
    max_dilation = 2          # -> dilation_factor = 2 -> dilation = 4 (all layers)
    residual_channels = 8
    skip_channels = 16
    output_channels = 8
    cond_channels = 4         # unused in forward()
    upsample_window = 4       # unused in forward()
    upsample_stride = 2       # unused in forward()

    dilation_factor = math.floor(math.log2(max_dilation)) + 1
    dilation = 2 ** dilation_factor

    B, T = 2, 16
    key = jax.random.PRNGKey(0)
    k_param, k_data = jax.random.split(key)

    params = init_params(
        k_param, vocab=input_channels, layers=layers,
        residual_channels=residual_channels, skip_channels=skip_channels,
        output_channels=output_channels, cond_channels=cond_channels,
        upsample_window=upsample_window)

    # one-time prep: slice/transpose/fuse weights, cast matmul weights to bf16
    prep = prepare_params(params, layers=layers,
                          residual_channels=residual_channels,
                          skip_channels=skip_channels,
                          mm_dtype=jnp.bfloat16)

    # forward_input: the module does `a = forward_input[0]` then embeds a (B, T)
    # integer tensor, so feed a (1, B, T) int32 array.
    forward_input = jax.random.randint(
        k_data, (1, B, T), 0, input_channels, dtype=jnp.int32)

    out = wavenet_forward(forward_input, prep, layers=layers, dilation=dilation)
    out = jax.block_until_ready(out)

    # Reference with the SAME matmul-operand precision (bf16 operands, f32
    # accumulation/elementwise) -> tight comparison; mm_dtype=float32 gives the
    # exact original-module math if full-f32 matmuls are required.
    ref = wavenet_reference(
        forward_input, params, layers=layers, dilation=dilation,
        residual_channels=residual_channels, vocab=input_channels,
        mm_dtype=jnp.bfloat16)
    ref = jax.block_until_ready(ref)

    assert out.shape == (B, output_channels, T), out.shape
    np.testing.assert_allclose(np.asarray(out), np.asarray(ref),
                               rtol=2e-3, atol=2e-3)
    # softmax uses exact normalization -> rows over dim=1 sum to 1
    np.testing.assert_allclose(np.asarray(out).sum(axis=1),
                               np.ones((B, T)), rtol=1e-4, atol=1e-4)

    print("KERNEL_OK")
</pallas_src>

<mosaic_0001>
module attributes {stable_mosaic.version = 11 : i64} {
  func.func @_wavenet_kernel(%arg0: i32, %arg1: memref<1x1x16xi32, #tpu.memory_space<vmem>>, %arg2: memref<8x8xbf16, #tpu.memory_space<vmem>>, %arg3: memref<3x8x16xbf16, #tpu.memory_space<vmem>>, %arg4: memref<3x8x1xf32, #tpu.memory_space<vmem>>, %arg5: memref<3x24x8xbf16, #tpu.memory_space<vmem>>, %arg6: memref<3x24x1xf32, #tpu.memory_space<vmem>>, %arg7: memref<8x16xbf16, #tpu.memory_space<vmem>>, %arg8: memref<8x8xbf16, #tpu.memory_space<vmem>>, %arg9: memref<1x8x16xf32, #tpu.memory_space<vmem>>, %arg10: memref<16x16xf32, #tpu.memory_space<vmem>>) attributes {dimension_semantics = [#tpu.dimension_semantics<parallel>], iteration_bounds = array<i64: 2>, scalar_prefetch = 0 : i64, scratch_operands = 1 : i64, tpu.core_type = #tpu.core_type<tc>, window_params = [{transform_indices = @transform_0, window_bounds = array<i64: 1, 1, 16>}, {pipeline_mode = #tpu.pipeline_mode<synchronous>, transform_indices = @transform_1, window_bounds = array<i64: 8, 8>}, {pipeline_mode = #tpu.pipeline_mode<synchronous>, transform_indices = @transform_2, window_bounds = array<i64: 3, 8, 16>}, {pipeline_mode = #tpu.pipeline_mode<synchronous>, transform_indices = @transform_3, window_bounds = array<i64: 3, 8, 1>}, {pipeline_mode = #tpu.pipeline_mode<synchronous>, transform_indices = @transform_4, window_bounds = array<i64: 3, 24, 8>}, {pipeline_mode = #tpu.pipeline_mode<synchronous>, transform_indices = @transform_5, window_bounds = array<i64: 3, 24, 1>}, {pipeline_mode = #tpu.pipeline_mode<synchronous>, transform_indices = @transform_6, window_bounds = array<i64: 8, 16>}, {pipeline_mode = #tpu.pipeline_mode<synchronous>, transform_indices = @transform_7, window_bounds = array<i64: 8, 8>}, {transform_indices = @transform_8, window_bounds = array<i64: 1, 8, 16>}]} {
    %c0 = arith.constant 0 : index
    %c0_0 = arith.constant 0 : index
    %c0_1 = arith.constant 0 : index
    %0 = vector.load %arg1[%c0, %c0_0, %c0_1] : memref<1x1x16xi32, #tpu.memory_space<vmem>>, vector<1x1x16xi32>
    %1 = vector.shape_cast %0 : vector<1x1x16xi32> to vector<1x16xi32>
    %2 = tpu.iota {dimensions = array<i32: 0>} : vector<8x16xi32>
    %3 = vector.broadcast %1 : vector<1x16xi32> to vector<8x16xi32>
    %4 = arith.cmpi eq, %2, %3 : vector<8x16xi32>
    %5 = arith.extui %4 : vector<8x16xi1> to vector<8x16xi32>
    %6 = arith.sitofp %5 : vector<8x16xi32> to vector<8x16xf32>
    %7 = arith.truncf %6 : vector<8x16xf32> to vector<8x16xbf16>
    %c0_2 = arith.constant 0 : index
    %c0_3 = arith.constant 0 : index
    %8 = vector.load %arg2[%c0_2, %c0_3] : memref<8x8xbf16, #tpu.memory_space<vmem>>, vector<8x8xbf16>
    %cst = arith.constant dense<0.000000e+00> : vector<8x16xf32>
    %9 = tpu.matmul %8, %7, %cst {dimension_numbers = #tpu.dot_dimension_numbers<[1], [0], [0], [1], [0, 0, 1, 1], [], []>} : vector<8x8xbf16>, vector<8x16xbf16>, vector<8x16xf32> -> vector<8x16xf32>
    %10 = tpu.iota {dimensions = array<i32: 0>} : vector<16x16xi32>
    %11 = tpu.iota {dimensions = array<i32: 1>} : vector<16x16xi32>
    %c4_i32 = arith.constant 4 : i32
    %12 = vector.broadcast %c4_i32 : i32 to vector<16x16xi32>
    %13 = arith.subi %11, %12 : vector<16x16xi32>
    %14 = arith.cmpi eq, %10, %13 : vector<16x16xi32>
    %15 = arith.extui %14 : vector<16x16xi1> to vector<16x16xi32>
    %16 = arith.sitofp %15 : vector<16x16xi32> to vector<16x16xf32>
    %17 = arith.truncf %16 : vector<16x16xf32> to vector<16x16xbf16>
    %cst_4 = arith.constant 0.000000e+00 : f32
    %18 = vector.broadcast %cst_4 : f32 to vector<16x16xf32>
    %c0_5 = arith.constant 0 : index
    %c0_6 = arith.constant 0 : index
    %19 = vector.load %arg10[%c0_5, %c0_6] : memref<16x16xf32, #tpu.memory_space<vmem>>, vector<16x16xf32>
    tpu.vector_store %arg10[%c0_5, %c0_6], %18 {strides = array<i32>} : memref<16x16xf32, #tpu.memory_space<vmem>>, vector<16x16xf32>,
    %20 = arith.truncf %9 : vector<8x16xf32> to vector<8x16xbf16>
    %cst_7 = arith.constant dense<0.000000e+00> : vector<8x16xf32>
    %21 = tpu.matmul %20, %17, %cst_7 {dimension_numbers = #tpu.dot_dimension_numbers<[1], [0], [0], [1], [0, 0, 1, 1], [], []>} : vector<8x16xbf16>, vector<16x16xbf16>, vector<8x16xf32> -> vector<8x16xf32>
    %22 = tpu.concatenate %21, %9 in 0 : vector<8x16xf32>, vector<8x16xf32> -> vector<16x16xf32>
    %23 = arith.truncf %22 : vector<16x16xf32> to vector<16x16xbf16>
    %c0_8 = arith.constant 0 : index
    %c0_9 = arith.constant 0 : index
    %c0_10 = arith.constant 0 : index
    %24 = vector.load %arg3[%c0_8, %c0_9, %c0_10] : memref<3x8x16xbf16, #tpu.memory_space<vmem>>, vector<1x8x16xbf16>
    %25 = vector.shape_cast %24 : vector<1x8x16xbf16> to vector<8x16xbf16>
    %cst_11 = arith.constant dense<0.000000e+00> : vector<8x16xf32>
    %26 = tpu.matmul %25, %23, %cst_11 {dimension_numbers = #tpu.dot_dimension_numbers<[1], [0], [0], [1], [0, 0, 1, 1], [], []>} : vector<8x16xbf16>, vector<16x16xbf16>, vector<8x16xf32> -> vector<8x16xf32>
    %c0_12 = arith.constant 0 : index
    %c0_13 = arith.constant 0 : index
    %c0_14 = arith.constant 0 : index
    %27 = vector.load %arg4[%c0_12, %c0_13, %c0_14] : memref<3x8x1xf32, #tpu.memory_space<vmem>>, vector<1x8x1xf32>
    %28 = vector.shape_cast %27 : vector<1x8x1xf32> to vector<8x1xf32>
    %29 = vector.broadcast %28 : vector<8x1xf32> to vector<8x16xf32>
    %30 = arith.addf %26, %29 : vector<8x16xf32>
    %cst_15 = arith.constant -3.000000e+01 : f32
    %cst_16 = arith.constant 3.000000e+01 : f32
    %31 = vector.broadcast %cst_15 : f32 to vector<8x16xf32>
    %32 = arith.maximumf %31, %30 : vector<8x16xf32>
    %33 = vector.broadcast %cst_16 : f32 to vector<8x16xf32>
    %34 = arith.minimumf %33, %32 : vector<8x16xf32>
    %cst_17 = arith.constant 0.000000e+00 : f32
    %35 = vector.broadcast %cst_17 : f32 to vector<8x16xf32>
    %36 = arith.subf %35, %34 : vector<8x16xf32>
    %37 = math.exp %36 : vector<8x16xf32>
    %cst_18 = arith.constant 1.000000e+00 : f32
    %38 = vector.broadcast %cst_18 : f32 to vector<8x16xf32>
    %39 = arith.subf %38, %37 : vector<8x16xf32>
    %40 = arith.mulf %37, %37 : vector<8x16xf32>
    %cst_19 = arith.constant 1.000000e+00 : f32
    %41 = vector.broadcast %cst_19 : f32 to vector<8x16xf32>
    %42 = arith.addf %41, %40 : vector<8x16xf32>
    %43 = arith.divf %39, %42 : vector<8x16xf32>
    %c0_20 = arith.constant 0 : index
    %c0_21 = arith.constant 0 : index
    %c0_22 = arith.constant 0 : index
    %44 = vector.load %arg5[%c0_20, %c0_21, %c0_22] : memref<3x24x8xbf16, #tpu.memory_space<vmem>>, vector<1x24x8xbf16>
    %45 = vector.shape_cast %44 : vector<1x24x8xbf16> to vector<24x8xbf16>
    %46 = arith.truncf %43 : vector<8x16xf32> to vector<8x16xbf16>
    %cst_23 = arith.constant dense<0.000000e+00> : vector<24x16xf32>
    %47 = tpu.matmul %45, %46, %cst_23 {dimension_numbers = #tpu.dot_dimension_numbers<[1], [0], [0], [1], [0, 0, 1, 1], [], []>} : vector<24x8xbf16>, vector<8x16xbf16>, vector<24x16xf32> -> vector<24x16xf32>
    %c0_24 = arith.constant 0 : index
    %c0_25 = arith.constant 0 : index
    %c0_26 = arith.constant 0 : index
    %48 = vector.load %arg6[%c0_24, %c0_25, %c0_26] : memref<3x24x1xf32, #tpu.memory_space<vmem>>, vector<1x24x1xf32>
    %49 = vector.shape_cast %48 : vector<1x24x1xf32> to vector<24x1xf32>
    %50 = vector.broadcast %49 : vector<24x1xf32> to vector<24x16xf32>
    %51 = arith.addf %47, %50 : vector<24x16xf32>
    %52 = vector.extract_strided_slice %51 {offsets = [0, 0], sizes = [8, 16], strides = [1, 1]} : vector<24x16xf32> to vector<8x16xf32>
    %53 = arith.addf %52, %9 : vector<8x16xf32>
    %c0_27 = arith.constant 0 : index
    %c0_28 = arith.constant 0 : index
    %54 = vector.load %arg10[%c0_27, %c0_28] : memref<16x16xf32, #tpu.memory_space<vmem>>, vector<16x16xf32>
    %55 = vector.extract_strided_slice %51 {offsets = [8, 0], sizes = [16, 16], strides = [1, 1]} : vector<24x16xf32> to vector<16x16xf32>
    %56 = arith.addf %54, %55 : vector<16x16xf32>
    %c0_29 = arith.constant 0 : index
    %c0_30 = arith.constant 0 : index
    %57 = vector.load %arg10[%c0_29, %c0_30] : memref<16x16xf32, #tpu.memory_space<vmem>>, vector<16x16xf32>
    tpu.vector_store %arg10[%c0_29, %c0_30], %56 {strides = array<i32>} : memref<16x16xf32, #tpu.memory_space<vmem>>, vector<16x16xf32>,
    %58 = arith.truncf %53 : vector<8x16xf32> to vector<8x16xbf16>
    %cst_31 = arith.constant dense<0.000000e+00> : vector<8x16xf32>
    %59 = tpu.matmul %58, %17, %cst_31 {dimension_numbers = #tpu.dot_dimension_numbers<[1], [0], [0], [1], [0, 0, 1, 1], [], []>} : vector<8x16xbf16>, vector<16x16xbf16>, vector<8x16xf32> -> vector<8x16xf32>
    %60 = tpu.concatenate %59, %53 in 0 : vector<8x16xf32>, vector<8x16xf32> -> vector<16x16xf32>
    %61 = arith.truncf %60 : vector<16x16xf32> to vector<16x16xbf16>
    %c1 = arith.constant 1 : index
    %c0_32 = arith.constant 0 : index
    %c0_33 = arith.constant 0 : index
    %62 = vector.load %arg3[%c1, %c0_32, %c0_33] : memref<3x8x16xbf16, #tpu.memory_space<vmem>>, vector<1x8x16xbf16>
    %63 = vector.shape_cast %62 : vector<1x8x16xbf16> to vector<8x16xbf16>
    %cst_34 = arith.constant dense<0.000000e+00> : vector<8x16xf32>
    %64 = tpu.matmul %63, %61, %cst_34 {dimension_numbers = #tpu.dot_dimension_numbers<[1], [0], [0], [1], [0, 0, 1, 1], [], []>} : vector<8x16xbf16>, vector<16x16xbf16>, vector<8x16xf32> -> vector<8x16xf32>
    %c1_35 = arith.constant 1 : index
    %c0_36 = arith.constant 0 : index
    %c0_37 = arith.constant 0 : index
    %65 = vector.load %arg4[%c1_35, %c0_36, %c0_37] : memref<3x8x1xf32, #tpu.memory_space<vmem>>, vector<1x8x1xf32>
    %66 = vector.shape_cast %65 : vector<1x8x1xf32> to vector<8x1xf32>
    %67 = vector.broadcast %66 : vector<8x1xf32> to vector<8x16xf32>
    %68 = arith.addf %64, %67 : vector<8x16xf32>
    %cst_38 = arith.constant -3.000000e+01 : f32
    %cst_39 = arith.constant 3.000000e+01 : f32
    %69 = vector.broadcast %cst_38 : f32 to vector<8x16xf32>
    %70 = arith.maximumf %69, %68 : vector<8x16xf32>
    %71 = vector.broadcast %cst_39 : f32 to vector<8x16xf32>
    %72 = arith.minimumf %71, %70 : vector<8x16xf32>
    %cst_40 = arith.constant 0.000000e+00 : f32
    %73 = vector.broadcast %cst_40 : f32 to vector<8x16xf32>
    %74 = arith.subf %73, %72 : vector<8x16xf32>
    %75 = math.exp %74 : vector<8x16xf32>
    %cst_41 = arith.constant 1.000000e+00 : f32
    %76 = vector.broadcast %cst_41 : f32 to vector<8x16xf32>
    %77 = arith.subf %76, %75 : vector<8x16xf32>
    %78 = arith.mulf %75, %75 : vector<8x16xf32>
    %cst_42 = arith.constant 1.000000e+00 : f32
    %79 = vector.broadcast %cst_42 : f32 to vector<8x16xf32>
    %80 = arith.addf %79, %78 : vector<8x16xf32>
    %81 = arith.divf %77, %80 : vector<8x16xf32>
    %c1_43 = arith.constant 1 : index
    %c0_44 = arith.constant 0 : index
    %c0_45 = arith.constant 0 : index
    %82 = vector.load %arg5[%c1_43, %c0_44, %c0_45] : memref<3x24x8xbf16, #tpu.memory_space<vmem>>, vector<1x24x8xbf16>
    %83 = vector.shape_cast %82 : vector<1x24x8xbf16> to vector<24x8xbf16>
    %84 = arith.truncf %81 : vector<8x16xf32> to vector<8x16xbf16>
    %cst_46 = arith.constant dense<0.000000e+00> : vector<24x16xf32>
    %85 = tpu.matmul %83, %84, %cst_46 {dimension_numbers = #tpu.dot_dimension_numbers<[1], [0], [0], [1], [0, 0, 1, 1], [], []>} : vector<24x8xbf16>, vector<8x16xbf16>, vector<24x16xf32> -> vector<24x16xf32>
    %c1_47 = arith.constant 1 : index
    %c0_48 = arith.constant 0 : index
    %c0_49 = arith.constant 0 : index
    %86 = vector.load %arg6[%c1_47, %c0_48, %c0_49] : memref<3x24x1xf32, #tpu.memory_space<vmem>>, vector<1x24x1xf32>
    %87 = vector.shape_cast %86 : vector<1x24x1xf32> to vector<24x1xf32>
    %88 = vector.broadcast %87 : vector<24x1xf32> to vector<24x16xf32>
    %89 = arith.addf %85, %88 : vector<24x16xf32>
    %90 = vector.extract_strided_slice %89 {offsets = [0, 0], sizes = [8, 16], strides = [1, 1]} : vector<24x16xf32> to vector<8x16xf32>
    %91 = arith.addf %90, %53 : vector<8x16xf32>
    %c0_50 = arith.constant 0 : index
    %c0_51 = arith.constant 0 : index
    %92 = vector.load %arg10[%c0_50, %c0_51] : memref<16x16xf32, #tpu.memory_space<vmem>>, vector<16x16xf32>
    %93 = vector.extract_strided_slice %89 {offsets = [8, 0], sizes = [16, 16], strides = [1, 1]} : vector<24x16xf32> to vector<16x16xf32>
    %94 = arith.addf %92, %93 : vector<16x16xf32>
    %c0_52 = arith.constant 0 : index
    %c0_53 = arith.constant 0 : index
    %95 = vector.load %arg10[%c0_52, %c0_53] : memref<16x16xf32, #tpu.memory_space<vmem>>, vector<16x16xf32>
    tpu.vector_store %arg10[%c0_52, %c0_53], %94 {strides = array<i32>} : memref<16x16xf32, #tpu.memory_space<vmem>>, vector<16x16xf32>,
    %96 = arith.truncf %91 : vector<8x16xf32> to vector<8x16xbf16>
    %cst_54 = arith.constant dense<0.000000e+00> : vector<8x16xf32>
    %97 = tpu.matmul %96, %17, %cst_54 {dimension_numbers = #tpu.dot_dimension_numbers<[1], [0], [0], [1], [0, 0, 1, 1], [], []>} : vector<8x16xbf16>, vector<16x16xbf16>, vector<8x16xf32> -> vector<8x16xf32>
    %98 = tpu.concatenate %97, %91 in 0 : vector<8x16xf32>, vector<8x16xf32> -> vector<16x16xf32>
    %99 = arith.truncf %98 : vector<16x16xf32> to vector<16x16xbf16>
    %c2 = arith.constant 2 : index
    %c0_55 = arith.constant 0 : index
    %c0_56 = arith.constant 0 : index
    %100 = vector.load %arg3[%c2, %c0_55, %c0_56] : memref<3x8x16xbf16, #tpu.memory_space<vmem>>, vector<1x8x16xbf16>
    %101 = vector.shape_cast %100 : vector<1x8x16xbf16> to vector<8x16xbf16>
    %cst_57 = arith.constant dense<0.000000e+00> : vector<8x16xf32>
    %102 = tpu.matmul %101, %99, %cst_57 {dimension_numbers = #tpu.dot_dimension_numbers<[1], [0], [0], [1], [0, 0, 1, 1], [], []>} : vector<8x16xbf16>, vector<16x16xbf16>, vector<8x16xf32> -> vector<8x16xf32>
    %c2_58 = arith.constant 2 : index
    %c0_59 = arith.constant 0 : index
    %c0_60 = arith.constant 0 : index
    %103 = vector.load %arg4[%c2_58, %c0_59, %c0_60] : memref<3x8x1xf32, #tpu.memory_space<vmem>>, vector<1x8x1xf32>
    %104 = vector.shape_cast %103 : vector<1x8x1xf32> to vector<8x1xf32>
    %105 = vector.broadcast %104 : vector<8x1xf32> to vector<8x16xf32>
    %106 = arith.addf %102, %105 : vector<8x16xf32>
    %cst_61 = arith.constant -3.000000e+01 : f32
    %cst_62 = arith.constant 3.000000e+01 : f32
    %107 = vector.broadcast %cst_61 : f32 to vector<8x16xf32>
    %108 = arith.maximumf %107, %106 : vector<8x16xf32>
    %109 = vector.broadcast %cst_62 : f32 to vector<8x16xf32>
    %110 = arith.minimumf %109, %108 : vector<8x16xf32>
    %cst_63 = arith.constant 0.000000e+00 : f32
    %111 = vector.broadcast %cst_63 : f32 to vector<8x16xf32>
    %112 = arith.subf %111, %110 : vector<8x16xf32>
    %113 = math.exp %112 : vector<8x16xf32>
    %cst_64 = arith.constant 1.000000e+00 : f32
    %114 = vector.broadcast %cst_64 : f32 to vector<8x16xf32>
    %115 = arith.subf %114, %113 : vector<8x16xf32>
    %116 = arith.mulf %113, %113 : vector<8x16xf32>
    %cst_65 = arith.constant 1.000000e+00 : f32
    %117 = vector.broadcast %cst_65 : f32 to vector<8x16xf32>
    %118 = arith.addf %117, %116 : vector<8x16xf32>
    %119 = arith.divf %115, %118 : vector<8x16xf32>
    %c2_66 = arith.constant 2 : index
    %c0_67 = arith.constant 0 : index
    %c0_68 = arith.constant 0 : index
    %120 = vector.load %arg5[%c2_66, %c0_67, %c0_68] : memref<3x24x8xbf16, #tpu.memory_space<vmem>>, vector<1x24x8xbf16>
    %121 = vector.shape_cast %120 : vector<1x24x8xbf16> to vector<24x8xbf16>
    %122 = arith.truncf %119 : vector<8x16xf32> to vector<8x16xbf16>
    %cst_69 = arith.constant dense<0.000000e+00> : vector<24x16xf32>
    %123 = tpu.matmul %121, %122, %cst_69 {dimension_numbers = #tpu.dot_dimension_numbers<[1], [0], [0], [1], [0, 0, 1, 1], [], []>} : vector<24x8xbf16>, vector<8x16xbf16>, vector<24x16xf32> -> vector<24x16xf32>
    %c2_70 = arith.constant 2 : index
    %c0_71 = arith.constant 0 : index
    %c0_72 = arith.constant 0 : index
    %124 = vector.load %arg6[%c2_70, %c0_71, %c0_72] : memref<3x24x1xf32, #tpu.memory_space<vmem>>, vector<1x24x1xf32>
    %125 = vector.shape_cast %124 : vector<1x24x1xf32> to vector<24x1xf32>
    %126 = vector.broadcast %125 : vector<24x1xf32> to vector<24x16xf32>
    %127 = arith.addf %123, %126 : vector<24x16xf32>
    %c0_73 = arith.constant 0 : index
    %c0_74 = arith.constant 0 : index
    %128 = vector.load %arg10[%c0_73, %c0_74] : memref<16x16xf32, #tpu.memory_space<vmem>>, vector<16x16xf32>
    %129 = vector.extract_strided_slice %127 {offsets = [8, 0], sizes = [16, 16], strides = [1, 1]} : vector<24x16xf32> to vector<16x16xf32>
    %130 = arith.addf %128, %129 : vector<16x16xf32>
    %c0_75 = arith.constant 0 : index
    %c0_76 = arith.constant 0 : index
    %131 = vector.load %arg10[%c0_75, %c0_76] : memref<16x16xf32, #tpu.memory_space<vmem>>, vector<16x16xf32>
    tpu.vector_store %arg10[%c0_75, %c0_76], %130 {strides = array<i32>} : memref<16x16xf32, #tpu.memory_space<vmem>>, vector<16x16xf32>,
    %c0_77 = arith.constant 0 : index
    %c0_78 = arith.constant 0 : index
    %132 = vector.load %arg10[%c0_77, %c0_78] : memref<16x16xf32, #tpu.memory_space<vmem>>, vector<16x16xf32>
    %cst_79 = arith.constant 0.000000e+00 : f32
    %133 = vector.broadcast %cst_79 : f32 to vector<16x16xf32>
    %134 = arith.maximumf %132, %133 : vector<16x16xf32>
    %c0_80 = arith.constant 0 : index
    %c0_81 = arith.constant 0 : index
    %135 = vector.load %arg7[%c0_80, %c0_81] : memref<8x16xbf16, #tpu.memory_space<vmem>>, vector<8x16xbf16>
    %136 = arith.truncf %134 : vector<16x16xf32> to vector<16x16xbf16>
    %cst_82 = arith.constant dense<0.000000e+00> : vector<8x16xf32>
    %137 = tpu.matmul %135, %136, %cst_82 {dimension_numbers = #tpu.dot_dimension_numbers<[1], [0], [0], [1], [0, 0, 1, 1], [], []>} : vector<8x16xbf16>, vector<16x16xbf16>, vector<8x16xf32> -> vector<8x16xf32>
    %cst_83 = arith.constant 0.000000e+00 : f32
    %138 = vector.broadcast %cst_83 : f32 to vector<8x16xf32>
    %139 = arith.maximumf %137, %138 : vector<8x16xf32>
    %c0_84 = arith.constant 0 : index
    %c0_85 = arith.constant 0 : index
    %140 = vector.load %arg8[%c0_84, %c0_85] : memref<8x8xbf16, #tpu.memory_space<vmem>>, vector<8x8xbf16>
    %141 = arith.truncf %139 : vector<8x16xf32> to vector<8x16xbf16>
    %cst_86 = arith.constant dense<0.000000e+00> : vector<8x16xf32>
    %142 = tpu.matmul %140, %141, %cst_86 {dimension_numbers = #tpu.dot_dimension_numbers<[1], [0], [0], [1], [0, 0, 1, 1], [], []>} : vector<8x8xbf16>, vector<8x16xbf16>, vector<8x16xf32> -> vector<8x16xf32>
    %cst_87 = arith.constant dense<0xFF800000> : vector<16xf32>
    %143 = vector.multi_reduction <maximumf>, %142, %cst_87 [0] : vector<8x16xf32> to vector<16xf32>
    %144 = vector.shape_cast %143 : vector<16xf32> to vector<1x16xf32>
    %145 = vector.broadcast %144 : vector<1x16xf32> to vector<8x16xf32>
    %146 = arith.subf %142, %145 : vector<8x16xf32>
    %147 = math.exp %146 : vector<8x16xf32>
    %cst_88 = arith.constant dense<0.000000e+00> : vector<16xf32>
    %148 = vector.multi_reduction <add>, %147, %cst_88 [0] : vector<8x16xf32> to vector<16xf32>
    %149 = vector.shape_cast %148 : vector<16xf32> to vector<1x16xf32>
    %150 = vector.broadcast %149 : vector<1x16xf32> to vector<8x16xf32>
    %151 = arith.divf %147, %150 : vector<8x16xf32>
    %c0_89 = arith.constant 0 : index
    %c0_90 = arith.constant 0 : index
    %c0_91 = arith.constant 0 : index
    %152 = vector.load %arg9[%c0_89, %c0_90, %c0_91] : memref<1x8x16xf32, #tpu.memory_space<vmem>>, vector<1x8x16xf32>
    %153 = vector.shape_cast %152 : vector<1x8x16xf32> to vector<8x16xf32>
    %154 = vector.shape_cast %151 : vector<8x16xf32> to vector<1x8x16xf32>
    tpu.vector_store %arg9[%c0_89, %c0_90, %c0_91], %154 {strides = array<i32>} : memref<1x8x16xf32, #tpu.memory_space<vmem>>, vector<1x8x16xf32>,
    return
  }
  func.func @transform_0(%arg0: i32) -> (i32, i32, i32) {
    %c0_i32 = arith.constant 0 : i32
    %c0_i32_0 = arith.constant 0 : i32
    %c0_i32_1 = arith.constant 0 : i32
    return %arg0, %c0_i32, %c0_i32_0 : i32, i32, i32
  }
  func.func @transform_1(%arg0: i32) -> (i32, i32) {
    %c0_i32 = arith.constant 0 : i32
    %c0_i32_0 = arith.constant 0 : i32
    %c0_i32_1 = arith.constant 0 : i32
    return %c0_i32, %c0_i32_0 : i32, i32
  }
  func.func @transform_2(%arg0: i32) -> (i32, i32, i32) {
    %c0_i32 = arith.constant 0 : i32
    %c0_i32_0 = arith.constant 0 : i32
    %c0_i32_1 = arith.constant 0 : i32
    %c0_i32_2 = arith.constant 0 : i32
    return %c0_i32, %c0_i32_0, %c0_i32_1 : i32, i32, i32
  }
  func.func @transform_3(%arg0: i32) -> (i32, i32, i32) {
    %c0_i32 = arith.constant 0 : i32
    %c0_i32_0 = arith.constant 0 : i32
    %c0_i32_1 = arith.constant 0 : i32
    %c0_i32_2 = arith.constant 0 : i32
    return %c0_i32, %c0_i32_0, %c0_i32_1 : i32, i32, i32
  }
  func.func @transform_4(%arg0: i32) -> (i32, i32, i32) {
    %c0_i32 = arith.constant 0 : i32
    %c0_i32_0 = arith.constant 0 : i32
    %c0_i32_1 = arith.constant 0 : i32
    %c0_i32_2 = arith.constant 0 : i32
    return %c0_i32, %c0_i32_0, %c0_i32_1 : i32, i32, i32
  }
  func.func @transform_5(%arg0: i32) -> (i32, i32, i32) {
    %c0_i32 = arith.constant 0 : i32
    %c0_i32_0 = arith.constant 0 : i32
    %c0_i32_1 = arith.constant 0 : i32
    %c0_i32_2 = arith.constant 0 : i32
    return %c0_i32, %c0_i32_0, %c0_i32_1 : i32, i32, i32
  }
  func.func @transform_6(%arg0: i32) -> (i32, i32) {
    %c0_i32 = arith.constant 0 : i32
    %c0_i32_0 = arith.constant 0 : i32
    %c0_i32_1 = arith.constant 0 : i32
    return %c0_i32, %c0_i32_0 : i32, i32
  }
  func.func @transform_7(%arg0: i32) -> (i32, i32) {
    %c0_i32 = arith.constant 0 : i32
    %c0_i32_0 = arith.constant 0 : i32
    %c0_i32_1 = arith.constant 0 : i32
    return %c0_i32, %c0_i32_0 : i32, i32
  }
  func.func @transform_8(%arg0: i32) -> (i32, i32, i32) {
    %c0_i32 = arith.constant 0 : i32
    %c0_i32_0 = arith.constant 0 : i32
    %c0_i32_1 = arith.constant 0 : i32
    return %arg0, %c0_i32, %c0_i32_0 : i32, i32, i32
  }
}

</mosaic_0001>

<llo_original>
// kernel: tpu_custom_call.1
$region0: #{tpu_custom_call.1}
  #allocation0 [shape = 'u32[]', space=smem, size = 0x4, offset = 0x4, fixed_abs, tag = 'smem constant byte address 0x4 - core index']
  #allocation1 [shape = 'u32[144,128]{1,0:T(1,128)}', space=vmem, size = 0x12000, scoped, tag = 'internal scratch']
  #allocation2 [shape = 'f32[16,16]{1,0:T(8,128)}', space=vmem, size = 0x2000, scoped, tag = 'scratch operand']
  %s0 = inlined_call_operand.vmem [shape: s32[2,1,16], index: 0, kind: input, shape index: {}]
  %s1 = inlined_call_operand.vmem [shape: bf16[8,8], index: 1, kind: input, shape index: {}]
  %s2 = inlined_call_operand.vmem [shape: bf16[3,8,16], index: 2, kind: input, shape index: {}]
  %s3 = inlined_call_operand.vmem [shape: f32[3,8,1], index: 3, kind: input, shape index: {}]
  %s4 = inlined_call_operand.vmem [shape: bf16[3,24,8], index: 4, kind: input, shape index: {}]
  %s5 = inlined_call_operand.vmem [shape: f32[3,24,1], index: 5, kind: input, shape index: {}]
  %s6 = inlined_call_operand.vmem [shape: bf16[8,16], index: 6, kind: input, shape index: {}]
  %s7 = inlined_call_operand.vmem [shape: bf16[8,8], index: 7, kind: input, shape index: {}]
  %s8 = inlined_call_operand.hbm [shape: f32[2,8,16], index: 8, kind: output, shape index: {}]
  %s9 = sld [smem:[#allocation0]]
  $region65: #{tpu_custom_call.1} parent=0
    _
  %s11 = ssub.s32 1, %s9
  %s12 = scalar_select 0, %s11, %s9
  $region1: #{tpu_custom_call.1} parent=0
    #allocation3 [shape = 'u8[8192]{0}', space=vmem, size = 0x2000, scoped, tag = 'output window, operand 0']
    #allocation4 [shape = 's32[2]{0}', space=sflag, size = 0x8, scoped, tag = 'scoped memory for tpu_custom_call.1']
    %13 = vsyncpa [#allocation4], 0
    %s14 = scalar_lea.sflag [#allocation4], 1
    %15 = vsyncpa %s14, 0
    loop: start=0, step=1, limit=4
    $region2: #{tpu_custom_call.1} parent=1 // loop_pre_header
      _
    $region3: #{tpu_custom_call.1} parent=1 // loop_header
      %s17 = sphi 0, %s21
      %p18 = scmp.ge.s32.totalorder %s17, 4
      %s27 = sphi 0, %s29
      %s30 = sphi 0, %s27
      %s31 = sphi 0, %s30
      %s47 = sphi 0, %s31
      %s51 = sphi 0, %s51
      %s53 = sphi 0, %s51
      %s54 = sphi 0, %s53
      %s68 = sphi 0, %s54
      %s72 = sphi 0, %s72
      %s74 = sphi 0, %s72
      %s75 = sphi 0, %s74
      %s89 = sphi 0, %s75
      %s93 = sphi 0, %s93
      %s95 = sphi 0, %s93
      %s96 = sphi 0, %s95
      %s110 = sphi 0, %s96
      %s114 = sphi 0, %s114
      %s116 = sphi 0, %s114
      %s117 = sphi 0, %s116
      %s131 = sphi 0, %s117
      %s135 = sphi 0, %s135
      %s137 = sphi 0, %s135
      %s138 = sphi 0, %s137
      %s152 = sphi 0, %s138
      %s156 = sphi 0, %s156
      %s158 = sphi 0, %s156
      %s159 = sphi 0, %s158
      %s173 = sphi 0, %s159
      %s177 = sphi 0, %s177
      %s179 = sphi 0, %s177
      %s180 = sphi 0, %s179
      %s194 = sphi 0, %s180
      %s200 = sphi 0, %s202
      %s203 = sphi 0, %s200
      %s204 = sphi 0, %s203
      %s220 = sphi 0, %s204
    $region4: #{tpu_custom_call.1} parent=1 // loop_header_branch
      %20 = sbr.rel (%p18) target = $region8
    $region5: #{tpu_custom_call.1} parent=1 // loop_body
      %s22 = ssub.s32 %s17, 1
      %s23 = ssub.s32 %s17, 2
      %s24 = sadd.s32 %s17, 1
      %s25 = ssub.s32 %s17, %s24
      %p26 = scmp.eq.s32.totalorder %s25, 0
      %s28 = sadd.s32 %s27, 1
      %s29 = scalar_select %p26, %s27, %s28
      %p32 = pneg %p26
      %p33 = scmp.eq.s32.totalorder %s17, 1
      %p34 = por %p32, %p33
      %p35 = scmp.ne.s32.totalorder %s27, %s30
      %p36 = scmp.eq.s32.totalorder %s17, 0
      %p37 = por %p35, %p36
      %p38 = scmp.ne.s32.totalorder %s27, %s30
      %p39 = scmp.eq.s32.totalorder %s22, 1
      %p40 = por %p38, %p39
      %p41 = scmp.ne.s32.totalorder %s30, %s31
      %p42 = scmp.eq.s32.totalorder %s22, 0
      %p43 = por %p41, %p42
      %p44 = scmp.ne.s32.totalorder %s30, %s31
      %p45 = scmp.eq.s32.totalorder %s23, 1
      %p46 = por %p44, %p45
      %p48 = scmp.ne.s32.totalorder %s31, %s47
      %p49 = scmp.eq.s32.totalorder %s23, 0
      %p50 = por %p48, %p49
      %s52 = sadd.s32 %s51, 1
      %p55 = scmp.eq.s32.totalorder %s17, 1
      %p56 = scmp.ne.s32.totalorder %s51, %s53
      %p57 = scmp.eq.s32.totalorder %s17, 0
      %p58 = por %p56, %p57
      %p59 = scmp.ne.s32.totalorder %s51, %s53
      %p60 = scmp.eq.s32.totalorder %s22, 1
      %p61 = por %p59, %p60
      %p62 = scmp.ne.s32.totalorder %s53, %s54
      %p63 = scmp.eq.s32.totalorder %s22, 0
      %p64 = por %p62, %p63
      %p65 = scmp.ne.s32.totalorder %s53, %s54
      %p66 = scmp.eq.s32.totalorder %s23, 1
      %p67 = por %p65, %p66
      %p69 = scmp.ne.s32.totalorder %s54, %s68
      %p70 = scmp.eq.s32.totalorder %s23, 0
      %p71 = por %p69, %p70
      %s73 = sadd.s32 %s72, 1
      %p76 = scmp.eq.s32.totalorder %s17, 1
      %p77 = scmp.ne.s32.totalorder %s72, %s74
      %p78 = scmp.eq.s32.totalorder %s17, 0
      %p79 = por %p77, %p78
      %p80 = scmp.ne.s32.totalorder %s72, %s74
      %p81 = scmp.eq.s32.totalorder %s22, 1
      %p82 = por %p80, %p81
      %p83 = scmp.ne.s32.totalorder %s74, %s75
      %p84 = scmp.eq.s32.totalorder %s22, 0
      %p85 = por %p83, %p84
      %p86 = scmp.ne.s32.totalorder %s74, %s75
      %p87 = scmp.eq.s32.totalorder %s23, 1
      %p88 = por %p86, %p87
      %p90 = scmp.ne.s32.totalorder %s75, %s89
      %p91 = scmp.eq.s32.totalorder %s23, 0
      %p92 = por %p90, %p91
      %s94 = sadd.s32 %s93, 1
      %p97 = scmp.eq.s32.totalorder %s17, 1
      %p98 = scmp.ne.s32.totalorder %s93, %s95
      %p99 = scmp.eq.s32.totalorder %s17, 0
      %p100 = por %p98, %p99
      %p101 = scmp.ne.s32.totalorder %s93, %s95
      %p102 = scmp.eq.s32.totalorder %s22, 1
      %p103 = por %p101, %p102
      %p104 = scmp.ne.s32.totalorder %s95, %s96
      %p105 = scmp.eq.s32.totalorder %s22, 0
      %p106 = por %p104, %p105
      %p107 = scmp.ne.s32.totalorder %s95, %s96
      %p108 = scmp.eq.s32.totalorder %s23, 1
      %p109 = por %p107, %p108
      %p111 = scmp.ne.s32.totalorder %s96, %s110
      %p112 = scmp.eq.s32.totalorder %s23, 0
      %p113 = por %p111, %p112
      %s115 = sadd.s32 %s114, 1
      %p118 = scmp.eq.s32.totalorder %s17, 1
      %p119 = scmp.ne.s32.totalorder %s114, %s116
      %p120 = scmp.eq.s32.totalorder %s17, 0
      %p121 = por %p119, %p120
      %p122 = scmp.ne.s32.totalorder %s114, %s116
      %p123 = scmp.eq.s32.totalorder %s22, 1
      %p124 = por %p122, %p123
      %p125 = scmp.ne.s32.totalorder %s116, %s117
      %p126 = scmp.eq.s32.totalorder %s22, 0
      %p127 = por %p125, %p126
      %p128 = scmp.ne.s32.totalorder %s116, %s117
      %p129 = scmp.eq.s32.totalorder %s23, 1
      %p130 = por %p128, %p129
      %p132 = scmp.ne.s32.totalorder %s117, %s131
      %p133 = scmp.eq.s32.totalorder %s23, 0
      %p134 = por %p132, %p133
      %s136 = sadd.s32 %s135, 1
      %p139 = scmp.eq.s32.totalorder %s17, 1
      %p140 = scmp.ne.s32.totalorder %s135, %s137
      %p141 = scmp.eq.s32.totalorder %s17, 0
      %p142 = por %p140, %p141
      %p143 = scmp.ne.s32.totalorder %s135, %s137
      %p144 = scmp.eq.s32.totalorder %s22, 1
      %p145 = por %p143, %p144
      %p146 = scmp.ne.s32.totalorder %s137, %s138
      %p147 = scmp.eq.s32.totalorder %s22, 0
      %p148 = por %p146, %p147
      %p149 = scmp.ne.s32.totalorder %s137, %s138
      %p150 = scmp.eq.s32.totalorder %s23, 1
      %p151 = por %p149, %p150
      %p153 = scmp.ne.s32.totalorder %s138, %s152
      %p154 = scmp.eq.s32.totalorder %s23, 0
      %p155 = por %p153, %p154
      %s157 = sadd.s32 %s156, 1
      %p160 = scmp.eq.s32.totalorder %s17, 1
      %p161 = scmp.ne.s32.totalorder %s156, %s158
      %p162 = scmp.eq.s32.totalorder %s17, 0
      %p163 = por %p161, %p162
      %p164 = scmp.ne.s32.totalorder %s156, %s158
      %p165 = scmp.eq.s32.totalorder %s22, 1
      %p166 = por %p164, %p165
      %p167 = scmp.ne.s32.totalorder %s158, %s159
      %p168 = scmp.eq.s32.totalorder %s22, 0
      %p169 = por %p167, %p168
      %p170 = scmp.ne.s32.totalorder %s158, %s159
      %p171 = scmp.eq.s32.totalorder %s23, 1
      %p172 = por %p170, %p171
      %p174 = scmp.ne.s32.totalorder %s159, %s173
      %p175 = scmp.eq.s32.totalorder %s23, 0
      %p176 = por %p174, %p175
      %s178 = sadd.s32 %s177, 1
      %p181 = scmp.eq.s32.totalorder %s17, 1
      %p182 = scmp.ne.s32.totalorder %s177, %s179
      %p183 = scmp.eq.s32.totalorder %s17, 0
      %p184 = por %p182, %p183
      %p185 = scmp.ne.s32.totalorder %s177, %s179
      %p186 = scmp.eq.s32.totalorder %s22, 1
      %p187 = por %p185, %p186
      %p188 = scmp.ne.s32.totalorder %s179, %s180
      %p189 = scmp.eq.s32.totalorder %s22, 0
      %p190 = por %p188, %p189
      %p191 = scmp.ne.s32.totalorder %s179, %s180
      %p192 = scmp.eq.s32.totalorder %s23, 1
      %p193 = por %p191, %p192
      %p195 = scmp.ne.s32.totalorder %s180, %s194
      %p196 = scmp.eq.s32.totalorder %s23, 0
      %p197 = por %p195, %p196
      %s198 = ssub.s32 %s17, %s24
      %p199 = scmp.eq.s32.totalorder %s198, 0
      %s201 = sadd.s32 %s200, 1
      %s202 = scalar_select %p199, %s200, %s201
      %p205 = pneg %p199
      %p206 = scmp.eq.s32.totalorder %s17, 1
      %p207 = por %p205, %p206
      %p208 = scmp.ne.s32.totalorder %s200, %s203
      %p209 = scmp.eq.s32.totalorder %s17, 0
      %p210 = por %p208, %p209
      %p211 = scmp.ne.s32.totalorder %s200, %s203
      %p212 = scmp.eq.s32.totalorder %s22, 1
      %p213 = por %p211, %p212
      %p214 = scmp.ne.s32.totalorder %s203, %s204
      %p215 = scmp.eq.s32.totalorder %s22, 0
      %p216 = por %p214, %p215
      %p217 = scmp.ne.s32.totalorder %s203, %s204
      %p218 = scmp.eq.s32.totalorder %s23, 1
      %p219 = por %p217, %p218
      %p221 = scmp.ne.s32.totalorder %s204, %s220
      %p222 = scmp.eq.s32.totalorder %s23, 0
      %p223 = por %p221, %p222
      %p224 = scmp.le.s32.totalorder 1, %s17
      %p225 = scmp.lt.s32.totalorder %s17, 3
      %p226 = pnand %p224, %p225
      %p227 = pneg %p226
      // Predicated region
      $region9: #{tpu_custom_call.1} parent=5 // pred_check
        _
      $region10: #{tpu_custom_call.1} parent=5 // pred_check_branch
        %229 = sbr.rel (%p226) target = $region12
      $region11: #{tpu_custom_call.1} parent=5 // pred_region
        %s230 = ssub.s32 %s17, 1
        // Predicated region
        $region13: #{tpu_custom_call.1} parent=11 // pred_check
          %p231 = pneg %p64
        $region14: #{tpu_custom_call.1} parent=11 // pred_check_branch
          %233 = sbr.rel (%p231) target = $region16
        $region15: #{tpu_custom_call.1} parent=11 // pred_region
          _
        $region16: #{tpu_custom_call.1} parent=11 // pred_fallthru
          _
        // Predicated region
        $region17: #{tpu_custom_call.1} parent=11 // pred_check
          %p234 = pneg %p85
        $region18: #{tpu_custom_call.1} parent=11 // pred_check_branch
          %236 = sbr.rel (%p234) target = $region20
        $region19: #{tpu_custom_call.1} parent=11 // pred_region
          _
        $region20: #{tpu_custom_call.1} parent=11 // pred_fallthru
          _
        // Predicated region
        $region21: #{tpu_custom_call.1} parent=11 // pred_check
          %p237 = pneg %p106
        $region22: #{tpu_custom_call.1} parent=11 // pred_check_branch
          %239 = sbr.rel (%p237) target = $region24
        $region23: #{tpu_custom_call.1} parent=11 // pred_region
          _
        $region24: #{tpu_custom_call.1} parent=11 // pred_fallthru
          _
        // Predicated region
        $region25: #{tpu_custom_call.1} parent=11 // pred_check
          %p240 = pneg %p127
        $region26: #{tpu_custom_call.1} parent=11 // pred_check_branch
          %242 = sbr.rel (%p240) target = $region28
        $region27: #{tpu_custom_call.1} parent=11 // pred_region
          _
        $region28: #{tpu_custom_call.1} parent=11 // pred_fallthru
          _
        // Predicated region
        $region29: #{tpu_custom_call.1} parent=11 // pred_check
          %p243 = pneg %p148
        $region30: #{tpu_custom_call.1} parent=11 // pred_check_branch
          %245 = sbr.rel (%p243) target = $region32
        $region31: #{tpu_custom_call.1} parent=11 // pred_region
          _
        $region32: #{tpu_custom_call.1} parent=11 // pred_fallthru
          _
        // Predicated region
        $region33: #{tpu_custom_call.1} parent=11 // pred_check
          %p246 = pneg %p169
        $region34: #{tpu_custom_call.1} parent=11 // pred_check_branch
          %248 = sbr.rel (%p246) target = $region36
        $region35: #{tpu_custom_call.1} parent=11 // pred_region
          _
        $region36: #{tpu_custom_call.1} parent=11 // pred_fallthru
          _
        // Predicated region
        $region37: #{tpu_custom_call.1} parent=11 // pred_check
          %p249 = pneg %p190
        $region38: #{tpu_custom_call.1} parent=11 // pred_check_branch
          %251 = sbr.rel (%p249) target = $region40
        $region39: #{tpu_custom_call.1} parent=11 // pred_region
          _
        $region40: #{tpu_custom_call.1} parent=11 // pred_fallthru
          _
      $region12: #{tpu_custom_call.1} parent=5 // pred_fallthru
        _
      %p252 = scmp.lt.s32.totalorder %s17, 2
      // Predicated region
      $region41: #{tpu_custom_call.1} parent=5 // pred_check
        %p253 = pneg %p252
      $region42: #{tpu_custom_call.1} parent=5 // pred_check_branch
        %255 = sbr.rel (%p253) target = $region44
      $region43: #{tpu_custom_call.1} parent=5 // pred_region
        // Predicated region
        $region45: #{tpu_custom_call.1} parent=43 // pred_check
          %p256 = pneg %p37
        $region46: #{tpu_custom_call.1} parent=43 // pred_check_branch
          %258 = sbr.rel (%p256) target = $region48
        $region47: #{tpu_custom_call.1} parent=43 // pred_region
          %p259 = scmp.lt.s32.totalorder %s17, 1
          %s260 = scalar_select %p259, %s17, 1
          %s261 = scalar_lea.vmem %s0, %s260
        $region48: #{tpu_custom_call.1} parent=43 // pred_fallthru
          _
      $region44: #{tpu_custom_call.1} parent=5 // pred_fallthru
        _
      %p262 = scmp.le.s32.totalorder 1, %s17
      %p263 = scmp.lt.s32.totalorder %s17, 3
      %p264 = pnand %p262, %p263
      %p265 = pneg %p264
      // Predicated region
      $region49: #{tpu_custom_call.1} parent=5 // pred_check
        _
      $region50: #{tpu_custom_call.1} parent=5 // pred_check_branch
        %267 = sbr.rel (%p264) target = $region52
      $region51: #{tpu_custom_call.1} parent=5 // pred_region
        %s268 = ssub.s32 %s17, 1
        %p269 = scmp.lt.s32.totalorder %s22, 1
        %s270 = scalar_select %p269, %s22, 1
        %s271 = scalar_lea.vmem %s0, %s270
        %p272 = pneg %p43
        %p273 = pneg %p40
        %p274 = pneg %p64
        %p275 = pneg %p61
        %p276 = pneg %p85
        %p277 = pneg %p82
        %p278 = pneg %p106
        %p279 = pneg %p103
        %p280 = pneg %p127
        %p281 = pneg %p124
        %p282 = pneg %p148
        %p283 = pneg %p145
        %p284 = pneg %p169
        %p285 = pneg %p166
        %p286 = pneg %p190
        %p287 = pneg %p187
        %p288 = pneg %p216
        %p289 = pneg %p213
        %s290 = sand.u32 %s203, 1
        %s291 = scalar_lea.sflag [#allocation4], %s290
        %s292 = sand.u32 %s203, 1
        %s293 = smul.addr %s292, 8
        %s294 = scalar_lea.vmem [#allocation3], %s293
        %p295 = scmp.lt.s32.totalorder %s22, 1
        %s296 = scalar_select %p295, %s22, 1
        %s297 = scalar_lea.vmem %s0, %s296
        %v299 = vld [vmem:[%s297] sm:$0x1]
        %v300 = vlaneseq
        %v301 = vshrl.u32 %v300, 7
        %v302 = vlaneseq
        %v303 = vshrl.u32 %v302, 7
        %v304 = vsub.s32 0, %v303
        %v305 = vrot.slane %v299, %v304
        %vm306 = vcmp.eq.s32.totalorder %v301, %v305
        %v307 = vsel %vm306, 1, 0
        %v308 = vcvt.s32.f32 %v307
        %v309 = vpack.c.bf16 %v308, %v308
        %v310 = vld [vmem:[%s1] sm:$0xf]
        %vm311 = vcmask 64512
        %v313 = vsel %vm311, %v310, 0
        %vm315 = vcmask 1043456
        %v317 = vsel %vm315, %v309, 0
        %319 = vmatprep.subr.bf16.mxu0 0
        %320 = vmatpush1.bf16.msra.mxu0 0
        %321 = vmatprep.subr.bf16.mxu0 0
        %322 = vmatpush1.bf16.msra.mxu0 0
        %323 = vmatprep.subr.bf16.mxu0 0
        %324 = vmatpush1.bf16.msra.mxu0 0
        %325 = vmatprep.subr.bf16.mxu0 0
        %326 = vmatpush1.bf16.msra.mxu0 0
        %327 = vmatprep.subr.bf16.mxu0 0
        %328 = vmatpush1.bf16.msra.mxu0 0
        %329 = vmatprep.subr.bf16.mxu0 0
        %330 = vmatpush1.bf16.msra.mxu0 0
        %331 = vmatprep.subr.bf16.mxu0 0
        %332 = vmatpush1.bf16.msra.mxu0 0
        %333 = vmatprep.subr.bf16.mxu0 0
        %334 = vmatpush1.bf16.msra.mxu0 %v317
        %335 = vmatprep.subr.bf16.mxu0 0
        %336 = vmatpush2.bf16.msra.mxu0 0
        %337 = vmatprep.subr.bf16.mxu0 0
        %338 = vmatpush2.bf16.msra.mxu0 0
        %339 = vmatprep.subr.bf16.mxu0 0
        %340 = vmatpush2.bf16.msra.mxu0 0
        %341 = vmatprep.subr.bf16.mxu0 0
        %342 = vmatpush2.bf16.msra.mxu0 0
        %343 = vmatprep.subr.bf16.mxu0 0
        %344 = vmatpush2.bf16.msra.mxu0 0
        %345 = vmatprep.subr.bf16.mxu0 0
        %346 = vmatpush2.bf16.msra.mxu0 0
        %347 = vmatprep.subr.bf16.mxu0 0
        %348 = vmatpush2.bf16.msra.mxu0 0
        %349 = vmatprep.subr.bf16.mxu0 0
        %350 = vmatpush2.bf16.msra.mxu0 0
        %351 = vmatprep.mubr.bf16.mxu0 0
        %352 = vmatmul.mubr.bf16.gmra.mxu0 %v313
        %v353 = vpop.f32.mrf.mxu0
        %v354 = vadd.f32 0.0, %v353
        %v355 = vpop.f32.mrf.mxu0
        %v356 = vpop.f32.mrf.mxu0
        %v357 = vpop.f32.mrf.mxu0
        %358 = vdwg.mxu0
        %v359 = vadd.s32 %v301, 8
        %v360 = vlaneseq
        %v361 = vand.u32 %v360, 127
        %v362 = vsub.s32 %v361, 4
        %vm363 = vcmp.eq.s32.totalorder %v301, %v362
        %vm364 = vcmp.eq.s32.totalorder %v359, %v362
        %v365 = vsel %vm363, 1, 0
        %v366 = vsel %vm364, 1, 0
        %v367 = vcvt.s32.f32 %v365
        %v368 = vcvt.s32.f32 %v366
        %v369 = vpack.c.bf16 %v368, %v367
        %vm370 = vcmask 130048
        %371 = vst.msk [vmem:[#allocation2] sm:$0xff] %vm370, 0.0
        %372 = vst.msk [vmem:[#allocation2 + $0x8] sm:$0xff] %vm370, 0.0
        %v373 = vpack.c.bf16 %v354, %v354
        %v375 = vsel %vm370, %v373, 0
        %377 = vmatprep.subr.bf16.mxu0 0
        %378 = vmatpush1.bf16.msra.mxu0 0
        %379 = vmatprep.subr.bf16.mxu0 0
        %380 = vmatpush1.bf16.msra.mxu0 0
        %381 = vmatprep.subr.bf16.mxu0 0
        %382 = vmatpush1.bf16.msra.mxu0 0
        %383 = vmatprep.subr.bf16.mxu0 0
        %384 = vmatpush1.bf16.msra.mxu0 0
        %385 = vmatprep.subr.bf16.mxu0 0
        %386 = vmatpush1.bf16.msra.mxu0 0
        %387 = vmatprep.subr.bf16.mxu0 0
        %388 = vmatpush1.bf16.msra.mxu0 0
        %389 = vmatprep.subr.bf16.mxu0 0
        %390 = vmatpush1.bf16.msra.mxu0 0
        %391 = vmatprep.subr.bf16.mxu0 0
        %392 = vmatpush1.bf16.msra.mxu0 %v369
        %393 = vmatprep.subr.bf16.mxu0 0
        %394 = vmatpush2.bf16.msra.mxu0 0
        %395 = vmatprep.subr.bf16.mxu0 0
        %396 = vmatpush2.bf16.msra.mxu0 0
        %397 = vmatprep.subr.bf16.mxu0 0
        %398 = vmatpush2.bf16.msra.mxu0 0
        %399 = vmatprep.subr.bf16.mxu0 0
        %400 = vmatpush2.bf16.msra.mxu0 0
        %401 = vmatprep.subr.bf16.mxu0 0
        %402 = vmatpush2.bf16.msra.mxu0 0
        %403 = vmatprep.subr.bf16.mxu0 0
        %404 = vmatpush2.bf16.msra.mxu0 0
        %405 = vmatprep.subr.bf16.mxu0 0
        %406 = vmatpush2.bf16.msra.mxu0 0
        %407 = vmatprep.subr.bf16.mxu0 0
        %408 = vmatpush2.bf16.msra.mxu0 0
        %409 = vmatprep.mubr.bf16.mxu0 0
        %410 = vmatmul.mubr.bf16.gmra.mxu0 %v375
        %v411 = vpop.f32.mrf.mxu0
        %v412 = vadd.f32 0.0, %v411
        %v413 = vpop.f32.mrf.mxu0
        %v414 = vpop.f32.mrf.mxu0
        %v415 = vpop.f32.mrf.mxu0
        %416 = vdwg.mxu0
        %v417 = vpack.c.bf16 %v354, %v412
        %v418 = vld [vmem:[%s2] sm:$0xf]
        %v419 = vld [vmem:[%s3] sm:$0xff]
        %421 = vset.pattern.permute.xlu0 0
        %422 = vperm.xlu0 %421, %v419
        %v423 = vpop.permute.xlu0 %422
        %v426 = vsel %vm370, %v418, 0
        %428 = vmatprep.subr.bf16.mxu0 0
        %429 = vmatpush1.bf16.msra.mxu0 0
        %430 = vmatprep.subr.bf16.mxu0 0
        %431 = vmatpush1.bf16.msra.mxu0 0
        %432 = vmatprep.subr.bf16.mxu0 0
        %433 = vmatpush1.bf16.msra.mxu0 0
        %434 = vmatprep.subr.bf16.mxu0 0
        %435 = vmatpush1.bf16.msra.mxu0 0
        %436 = vmatprep.subr.bf16.mxu0 0
        %437 = vmatpush1.bf16.msra.mxu0 0
        %438 = vmatprep.subr.bf16.mxu0 0
        %439 = vmatpush1.bf16.msra.mxu0 0
        %440 = vmatprep.subr.bf16.mxu0 0
        %441 = vmatpush1.bf16.msra.mxu0 0
        %442 = vmatprep.subr.bf16.mxu0 0
        %443 = vmatpush1.bf16.msra.mxu0 %v417
        %444 = vmatprep.subr.bf16.mxu0 0
        %445 = vmatpush2.bf16.msra.mxu0 0
        %446 = vmatprep.subr.bf16.mxu0 0
        %447 = vmatpush2.bf16.msra.mxu0 0
        %448 = vmatprep.subr.bf16.mxu0 0
        %449 = vmatpush2.bf16.msra.mxu0 0
        %450 = vmatprep.subr.bf16.mxu0 0
        %451 = vmatpush2.bf16.msra.mxu0 0
        %452 = vmatprep.subr.bf16.mxu0 0
        %453 = vmatpush2.bf16.msra.mxu0 0
        %454 = vmatprep.subr.bf16.mxu0 0
        %455 = vmatpush2.bf16.msra.mxu0 0
        %456 = vmatprep.subr.bf16.mxu0 0
        %457 = vmatpush2.bf16.msra.mxu0 0
        %458 = vmatprep.subr.bf16.mxu0 0
        %459 = vmatpush2.bf16.msra.mxu0 0
        %460 = vmatprep.mubr.bf16.mxu0 0
        %461 = vmatmul.mubr.bf16.gmra.mxu0 %v426
        %v462 = vpop.f32.mrf.mxu0
        %v463 = vadd.f32 %v423, %v462
        %v464 = vpop.f32.mrf.mxu0
        %v465 = vpop.f32.mrf.mxu0
        %v466 = vpop.f32.mrf.mxu0
        %467 = vdwg.mxu0
        %v468 = vmax.f32 %v463, -30.0
        %v469 = vmin.f32 %v468, 30.0
        %v470 = vsub.f32 0.0, %v469
        %v471 = vmul.f32 %v470, 1.442695
        %v472 = vpow.pop %v471
        %v473 = vsub.f32 1.0, %v472
        %v474 = vmul.f32 %v472, %v472
        %v475 = vadd.f32 %v474, 1.0
        %v476 = vrcp.pop %v475
        %v477 = vmul.f32 %v473, %v476
        %v478 = vld [vmem:[%s4] sm:$0xf]
        %v479 = vld [vmem:[%s4 + $0x4] sm:$0xf]
        %v480 = vld [vmem:[%s4 + $0x8] sm:$0xf]
        %v481 = vpack.c.bf16 %v477, %v477
        %v482 = vld [vmem:[%s5] sm:$0xff]
        %v483 = vld [vmem:[%s5 + $0x8] sm:$0xff]
        %v484 = vld [vmem:[%s5 + $0x10] sm:$0xff]
        %486 = vset.pattern.permute.xlu0 0
        %487 = vperm.xlu0 %486, %v482
        %v488 = vpop.permute.xlu0 %487
        %491 = vset.pattern.permute.xlu0 0
        %492 = vperm.xlu0 %491, %v483
        %v493 = vpop.permute.xlu0 %492
        %496 = vset.pattern.permute.xlu0 0
        %497 = vperm.xlu0 %496, %v484
        %v498 = vpop.permute.xlu0 %497
        %v503 = vunpack.c.l.b16 %v478
        %v504 = vunpack.c.l.b16 %v479
        %v505 = vunpack.c.l.b16 %v480
        %v506 = vpack.c.b16 %v504, %v503
        %v507 = vpack.c.b16 %v505, %v505
        %v509 = vsel %vm311, %v506, 0
        %v512 = vsel %vm311, %v507, 0
        %v515 = vsel %vm315, %v481, 0
        %517 = vmatprep.subr.bf16.mxu0 0
        %518 = vmatpush1.bf16.msra.mxu0 0
        %519 = vmatprep.subr.bf16.mxu0 0
        %520 = vmatpush1.bf16.msra.mxu0 0
        %521 = vmatprep.subr.bf16.mxu0 0
        %522 = vmatpush1.bf16.msra.mxu0 0
        %523 = vmatprep.subr.bf16.mxu0 0
        %524 = vmatpush1.bf16.msra.mxu0 0
        %525 = vmatprep.subr.bf16.mxu0 0
        %526 = vmatpush1.bf16.msra.mxu0 0
        %527 = vmatprep.subr.bf16.mxu0 0
        %528 = vmatpush1.bf16.msra.mxu0 0
        %529 = vmatprep.subr.bf16.mxu0 0
        %530 = vmatpush1.bf16.msra.mxu0 0
        %531 = vmatprep.subr.bf16.mxu0 0
        %532 = vmatpush1.bf16.msra.mxu0 %v515
        %533 = vmatprep.subr.bf16.mxu0 0
        %534 = vmatpush2.bf16.msra.mxu0 0
        %535 = vmatprep.subr.bf16.mxu0 0
        %536 = vmatpush2.bf16.msra.mxu0 0
        %537 = vmatprep.subr.bf16.mxu0 0
        %538 = vmatpush2.bf16.msra.mxu0 0
        %539 = vmatprep.subr.bf16.mxu0 0
        %540 = vmatpush2.bf16.msra.mxu0 0
        %541 = vmatprep.subr.bf16.mxu0 0
        %542 = vmatpush2.bf16.msra.mxu0 0
        %543 = vmatprep.subr.bf16.mxu0 0
        %544 = vmatpush2.bf16.msra.mxu0 0
        %545 = vmatprep.subr.bf16.mxu0 0
        %546 = vmatpush2.bf16.msra.mxu0 0
        %547 = vmatprep.subr.bf16.mxu0 0
        %548 = vmatpush2.bf16.msra.mxu0 0
        %549 = vmatprep.mubr.bf16.mxu0 0
        %550 = vmatmul.mubr.bf16.gmra.mxu0 %v509
        %v551 = vpop.f32.mrf.mxu0
        %v552 = vadd.f32 %v488, %v551
        %v553 = vpop.f32.mrf.mxu0
        %v554 = vpop.f32.mrf.mxu0
        %v555 = vadd.f32 %v493, %v554
        %v556 = vpop.f32.mrf.mxu0
        %557 = vmatprep.mubr.bf16.mxu0 0
        %558 = vmatmul.mubr.bf16.gmra.mxu0 %v512
        %v559 = vpop.f32.mrf.mxu0
        %v560 = vadd.f32 %v498, %v559
        %v561 = vpop.f32.mrf.mxu0
        %v562 = vpop.f32.mrf.mxu0
        %v563 = vpop.f32.mrf.mxu0
        %564 = vdwg.mxu0
        %v565 = vadd.f32 %v552, %v354
        %v566 = vld [vmem:[#allocation2] sm:$0xff]
        %v567 = vld [vmem:[#allocation2 + $0x8] sm:$0xff]
        %v568 = vadd.f32 %v566, %v555
        %v569 = vadd.f32 %v567, %v560
        %570 = vst.msk [vmem:[#allocation2] sm:$0xff] %vm370, %v568
        %571 = vst.msk [vmem:[#allocation2 + $0x8] sm:$0xff] %vm370, %v569
        %v572 = vpack.c.bf16 %v565, %v565
        %v574 = vsel %vm370, %v572, 0
        %576 = vmatprep.subr.bf16.mxu0 0
        %577 = vmatpush1.bf16.msra.mxu0 0
        %578 = vmatprep.subr.bf16.mxu0 0
        %579 = vmatpush1.bf16.msra.mxu0 0
        %580 = vmatprep.subr.bf16.mxu0 0
        %581 = vmatpush1.bf16.msra.mxu0 0
        %582 = vmatprep.subr.bf16.mxu0 0
        %583 = vmatpush1.bf16.msra.mxu0 0
        %584 = vmatprep.subr.bf16.mxu0 0
        %585 = vmatpush1.bf16.msra.mxu0 0
        %586 = vmatprep.subr.bf16.mxu0 0
        %587 = vmatpush1.bf16.msra.mxu0 0
        %588 = vmatprep.subr.bf16.mxu0 0
        %589 = vmatpush1.bf16.msra.mxu0 0
        %590 = vmatprep.subr.bf16.mxu0 0
        %591 = vmatpush1.bf16.msra.mxu0 %v369
        %592 = vmatprep.subr.bf16.mxu0 0
        %593 = vmatpush2.bf16.msra.mxu0 0
        %594 = vmatprep.subr.bf16.mxu0 0
        %595 = vmatpush2.bf16.msra.mxu0 0
        %596 = vmatprep.subr.bf16.mxu0 0
        %597 = vmatpush2.bf16.msra.mxu0 0
        %598 = vmatprep.subr.bf16.mxu0 0
        %599 = vmatpush2.bf16.msra.mxu0 0
        %600 = vmatprep.subr.bf16.mxu0 0
        %601 = vmatpush2.bf16.msra.mxu0 0
        %602 = vmatprep.subr.bf16.mxu0 0
        %603 = vmatpush2.bf16.msra.mxu0 0
        %604 = vmatprep.subr.bf16.mxu0 0
        %605 = vmatpush2.bf16.msra.mxu0 0
        %606 = vmatprep.subr.bf16.mxu0 0
        %607 = vmatpush2.bf16.msra.mxu0 0
        %608 = vmatprep.mubr.bf16.mxu0 0
        %609 = vmatmul.mubr.bf16.gmra.mxu0 %v574
        %v610 = vpop.f32.mrf.mxu0
        %v611 = vadd.f32 0.0, %v610
        %v612 = vpop.f32.mrf.mxu0
        %v613 = vpop.f32.mrf.mxu0
        %v614 = vpop.f32.mrf.mxu0
        %615 = vdwg.mxu0
        %v616 = vpack.c.bf16 %v565, %v611
        %s617 = scalar_lea.vmem %s2, 4
        %v618 = vld [vmem:[%s617] sm:$0xf]
        %s619 = scalar_lea.vmem %s3, 8
        %v620 = vld [vmem:[%s619] sm:$0xff]
        %622 = vset.pattern.permute.xlu0 0
        %623 = vperm.xlu0 %622, %v620
        %v624 = vpop.permute.xlu0 %623
        %v627 = vsel %vm370, %v618, 0
        %629 = vmatprep.subr.bf16.mxu0 0
        %630 = vmatpush1.bf16.msra.mxu0 0
        %631 = vmatprep.subr.bf16.mxu0 0
        %632 = vmatpush1.bf16.msra.mxu0 0
        %633 = vmatprep.subr.bf16.mxu0 0
        %634 = vmatpush1.bf16.msra.mxu0 0
        %635 = vmatprep.subr.bf16.mxu0 0
        %636 = vmatpush1.bf16.msra.mxu0 0
        %637 = vmatprep.subr.bf16.mxu0 0
        %638 = vmatpush1.bf16.msra.mxu0 0
        %639 = vmatprep.subr.bf16.mxu0 0
        %640 = vmatpush1.bf16.msra.mxu0 0
        %641 = vmatprep.subr.bf16.mxu0 0
        %642 = vmatpush1.bf16.msra.mxu0 0
        %643 = vmatprep.subr.bf16.mxu0 0
        %644 = vmatpush1.bf16.msra.mxu0 %v616
        %645 = vmatprep.subr.bf16.mxu0 0
        %646 = vmatpush2.bf16.msra.mxu0 0
        %647 = vmatprep.subr.bf16.mxu0 0
        %648 = vmatpush2.bf16.msra.mxu0 0
        %649 = vmatprep.subr.bf16.mxu0 0
        %650 = vmatpush2.bf16.msra.mxu0 0
        %651 = vmatprep.subr.bf16.mxu0 0
        %652 = vmatpush2.bf16.msra.mxu0 0
        %653 = vmatprep.subr.bf16.mxu0 0
        %654 = vmatpush2.bf16.msra.mxu0 0
        %655 = vmatprep.subr.bf16.mxu0 0
        %656 = vmatpush2.bf16.msra.mxu0 0
        %657 = vmatprep.subr.bf16.mxu0 0
        %658 = vmatpush2.bf16.msra.mxu0 0
        %659 = vmatprep.subr.bf16.mxu0 0
        %660 = vmatpush2.bf16.msra.mxu0 0
        %661 = vmatprep.mubr.bf16.mxu0 0
        %662 = vmatmul.mubr.bf16.gmra.mxu0 %v627
        %v663 = vpop.f32.mrf.mxu0
        %v664 = vadd.f32 %v624, %v663
        %v665 = vpop.f32.mrf.mxu0
        %v666 = vpop.f32.mrf.mxu0
        %v667 = vpop.f32.mrf.mxu0
        %668 = vdwg.mxu0
        %v669 = vmax.f32 %v664, -30.0
        %v670 = vmin.f32 %v669, 30.0
        %v671 = vsub.f32 0.0, %v670
        %v672 = vmul.f32 %v671, 1.442695
        %v673 = vpow.pop %v672
        %v674 = vsub.f32 1.0, %v673
        %v675 = vmul.f32 %v673, %v673
        %v676 = vadd.f32 %v675, 1.0
        %v677 = vrcp.pop %v676
        %v678 = vmul.f32 %v674, %v677
        %s679 = scalar_lea.vmem %s4, 12
        %v680 = vld [vmem:[%s679] sm:$0xf]
        %v681 = vld [vmem:[%s679 + $0x4] sm:$0xf]
        %v682 = vld [vmem:[%s679 + $0x8] sm:$0xf]
        %v683 = vpack.c.bf16 %v678, %v678
        %s684 = scalar_lea.vmem %s5, 24
        %v685 = vld [vmem:[%s684] sm:$0xff]
        %v686 = vld [vmem:[%s684 + $0x8] sm:$0xff]
        %v687 = vld [vmem:[%s684 + $0x10] sm:$0xff]
        %689 = vset.pattern.permute.xlu0 0
        %690 = vperm.xlu0 %689, %v685
        %v691 = vpop.permute.xlu0 %690
        %694 = vset.pattern.permute.xlu0 0
        %695 = vperm.xlu0 %694, %v686
        %v696 = vpop.permute.xlu0 %695
        %699 = vset.pattern.permute.xlu0 0
        %700 = vperm.xlu0 %699, %v687
        %v701 = vpop.permute.xlu0 %700
        %v706 = vunpack.c.l.b16 %v680
        %v707 = vunpack.c.l.b16 %v681
        %v708 = vunpack.c.l.b16 %v682
        %v709 = vpack.c.b16 %v707, %v706
        %v710 = vpack.c.b16 %v708, %v708
        %v712 = vsel %vm311, %v709, 0
        %v715 = vsel %vm311, %v710, 0
        %v718 = vsel %vm315, %v683, 0
        %720 = vmatprep.subr.bf16.mxu0 0
        %721 = vmatpush1.bf16.msra.mxu0 0
        %722 = vmatprep.subr.bf16.mxu0 0
        %723 = vmatpush1.bf16.msra.mxu0 0
        %724 = vmatprep.subr.bf16.mxu0 0
        %725 = vmatpush1.bf16.msra.mxu0 0
        %726 = vmatprep.subr.bf16.mxu0 0
        %727 = vmatpush1.bf16.msra.mxu0 0
        %728 = vmatprep.subr.bf16.mxu0 0
        %729 = vmatpush1.bf16.msra.mxu0 0
        %730 = vmatprep.subr.bf16.mxu0 0
        %731 = vmatpush1.bf16.msra.mxu0 0
        %732 = vmatprep.subr.bf16.mxu0 0
        %733 = vmatpush1.bf16.msra.mxu0 0
        %734 = vmatprep.subr.bf16.mxu0 0
        %735 = vmatpush1.bf16.msra.mxu0 %v718
        %736 = vmatprep.subr.bf16.mxu0 0
        %737 = vmatpush2.bf16.msra.mxu0 0
        %738 = vmatprep.subr.bf16.mxu0 0
        %739 = vmatpush2.bf16.msra.mxu0 0
        %740 = vmatprep.subr.bf16.mxu0 0
        %741 = vmatpush2.bf16.msra.mxu0 0
        %742 = vmatprep.subr.bf16.mxu0 0
        %743 = vmatpush2.bf16.msra.mxu0 0
        %744 = vmatprep.subr.bf16.mxu0 0
        %745 = vmatpush2.bf16.msra.mxu0 0
        %746 = vmatprep.subr.bf16.mxu0 0
        %747 = vmatpush2.bf16.msra.mxu0 0
        %748 = vmatprep.subr.bf16.mxu0 0
        %749 = vmatpush2.bf16.msra.mxu0 0
        %750 = vmatprep.subr.bf16.mxu0 0
        %751 = vmatpush2.bf16.msra.mxu0 0
        %752 = vmatprep.mubr.bf16.mxu0 0
        %753 = vmatmul.mubr.bf16.gmra.mxu0 %v712
        %v754 = vpop.f32.mrf.mxu0
        %v755 = vadd.f32 %v691, %v754
        %v756 = vpop.f32.mrf.mxu0
        %v757 = vpop.f32.mrf.mxu0
        %v758 = vadd.f32 %v696, %v757
        %v759 = vpop.f32.mrf.mxu0
        %760 = vmatprep.mubr.bf16.mxu0 0
        %761 = vmatmul.mubr.bf16.gmra.mxu0 %v715
        %v762 = vpop.f32.mrf.mxu0
        %v763 = vadd.f32 %v701, %v762
        %v764 = vpop.f32.mrf.mxu0
        %v765 = vpop.f32.mrf.mxu0
        %v766 = vpop.f32.mrf.mxu0
        %767 = vdwg.mxu0
        %v768 = vadd.f32 %v755, %v565
        %v769 = vld [vmem:[#allocation2] sm:$0xff]
        %v770 = vld [vmem:[#allocation2 + $0x8] sm:$0xff]
        %v771 = vadd.f32 %v769, %v758
        %v772 = vadd.f32 %v770, %v763
        %773 = vst.msk [vmem:[#allocation2] sm:$0xff] %vm370, %v771
        %774 = vst.msk [vmem:[#allocation2 + $0x8] sm:$0xff] %vm370, %v772
        %v775 = vpack.c.bf16 %v768, %v768
        %v777 = vsel %vm370, %v775, 0
        %779 = vmatprep.subr.bf16.mxu0 0
        %780 = vmatpush1.bf16.msra.mxu0 0
        %781 = vmatprep.subr.bf16.mxu0 0
        %782 = vmatpush1.bf16.msra.mxu0 0
        %783 = vmatprep.subr.bf16.mxu0 0
        %784 = vmatpush1.bf16.msra.mxu0 0
        %785 = vmatprep.subr.bf16.mxu0 0
        %786 = vmatpush1.bf16.msra.mxu0 0
        %787 = vmatprep.subr.bf16.mxu0 0
        %788 = vmatpush1.bf16.msra.mxu0 0
        %789 = vmatprep.subr.bf16.mxu0 0
        %790 = vmatpush1.bf16.msra.mxu0 0
        %791 = vmatprep.subr.bf16.mxu0 0
        %792 = vmatpush1.bf16.msra.mxu0 0
        %793 = vmatprep.subr.bf16.mxu0 0
        %794 = vmatpush1.bf16.msra.mxu0 %v369
        %795 = vmatprep.subr.bf16.mxu0 0
        %796 = vmatpush2.bf16.msra.mxu0 0
        %797 = vmatprep.subr.bf16.mxu0 0
        %798 = vmatpush2.bf16.msra.mxu0 0
        %799 = vmatprep.subr.bf16.mxu0 0
        %800 = vmatpush2.bf16.msra.mxu0 0
        %801 = vmatprep.subr.bf16.mxu0 0
        %802 = vmatpush2.bf16.msra.mxu0 0
        %803 = vmatprep.subr.bf16.mxu0 0
        %804 = vmatpush2.bf16.msra.mxu0 0
        %805 = vmatprep.subr.bf16.mxu0 0
        %806 = vmatpush2.bf16.msra.mxu0 0
        %807 = vmatprep.subr.bf16.mxu0 0
        %808 = vmatpush2.bf16.msra.mxu0 0
        %809 = vmatprep.subr.bf16.mxu0 0
        %810 = vmatpush2.bf16.msra.mxu0 0
        %811 = vmatprep.mubr.bf16.mxu0 0
        %812 = vmatmul.mubr.bf16.gmra.mxu0 %v777
        %v813 = vpop.f32.mrf.mxu0
        %v814 = vadd.f32 0.0, %v813
        %v815 = vpop.f32.mrf.mxu0
        %v816 = vpop.f32.mrf.mxu0
        %v817 = vpop.f32.mrf.mxu0
        %818 = vdwg.mxu0
        %v819 = vpack.c.bf16 %v768, %v814
        %s820 = scalar_lea.vmem %s2, 8
        %v821 = vld [vmem:[%s820] sm:$0xf]
        %s822 = scalar_lea.vmem %s3, 16
        %v823 = vld [vmem:[%s822] sm:$0xff]
        %825 = vset.pattern.permute.xlu0 0
        %826 = vperm.xlu0 %825, %v823
        %v827 = vpop.permute.xlu0 %826
        %v830 = vsel %vm370, %v821, 0
        %832 = vmatprep.subr.bf16.mxu0 0
        %833 = vmatpush1.bf16.msra.mxu0 0
        %834 = vmatprep.subr.bf16.mxu0 0
        %835 = vmatpush1.bf16.msra.mxu0 0
        %836 = vmatprep.subr.bf16.mxu0 0
        %837 = vmatpush1.bf16.msra.mxu0 0
        %838 = vmatprep.subr.bf16.mxu0 0
        %839 = vmatpush1.bf16.msra.mxu0 0
        %840 = vmatprep.subr.bf16.mxu0 0
        %841 = vmatpush1.bf16.msra.mxu0 0
        %842 = vmatprep.subr.bf16.mxu0 0
        %843 = vmatpush1.bf16.msra.mxu0 0
        %844 = vmatprep.subr.bf16.mxu0 0
        %845 = vmatpush1.bf16.msra.mxu0 0
        %846 = vmatprep.subr.bf16.mxu0 0
        %847 = vmatpush1.bf16.msra.mxu0 %v819
        %848 = vmatprep.subr.bf16.mxu0 0
        %849 = vmatpush2.bf16.msra.mxu0 0
        %850 = vmatprep.subr.bf16.mxu0 0
        %851 = vmatpush2.bf16.msra.mxu0 0
        %852 = vmatprep.subr.bf16.mxu0 0
        %853 = vmatpush2.bf16.msra.mxu0 0
        %854 = vmatprep.subr.bf16.mxu0 0
        %855 = vmatpush2.bf16.msra.mxu0 0
        %856 = vmatprep.subr.bf16.mxu0 0
        %857 = vmatpush2.bf16.msra.mxu0 0
        %858 = vmatprep.subr.bf16.mxu0 0
        %859 = vmatpush2.bf16.msra.mxu0 0
        %860 = vmatprep.subr.bf16.mxu0 0
        %861 = vmatpush2.bf16.msra.mxu0 0
        %862 = vmatprep.subr.bf16.mxu0 0
        %863 = vmatpush2.bf16.msra.mxu0 0
        %864 = vmatprep.mubr.bf16.mxu0 0
        %865 = vmatmul.mubr.bf16.gmra.mxu0 %v830
        %v866 = vpop.f32.mrf.mxu0
        %v867 = vadd.f32 %v827, %v866
        %v868 = vpop.f32.mrf.mxu0
        %v869 = vpop.f32.mrf.mxu0
        %v870 = vpop.f32.mrf.mxu0
        %871 = vdwg.mxu0
        %v872 = vmax.f32 %v867, -30.0
        %v873 = vmin.f32 %v872, 30.0
        %v874 = vsub.f32 0.0, %v873
        %v875 = vmul.f32 %v874, 1.442695
        %v876 = vpow.pop %v875
        %v877 = vsub.f32 1.0, %v876
        %v878 = vmul.f32 %v876, %v876
        %v879 = vadd.f32 %v878, 1.0
        %v880 = vrcp.pop %v879
        %v881 = vmul.f32 %v877, %v880
        %s882 = scalar_lea.vmem %s4, 24
        %v883 = vld [vmem:[%s882] sm:$0xf]
        %v884 = vld [vmem:[%s882 + $0x4] sm:$0xf]
        %v885 = vld [vmem:[%s882 + $0x8] sm:$0xf]
        %v886 = vpack.c.bf16 %v881, %v881
        %s887 = scalar_lea.vmem %s5, 48
        %v888 = vld [vmem:[%s887] sm:$0xff]
        %v889 = vld [vmem:[%s887 + $0x8] sm:$0xff]
        %v890 = vld [vmem:[%s887 + $0x10] sm:$0xff]
        %892 = vset.pattern.permute.xlu0 0
        %893 = vperm.xlu0 %892, %v888
        %v894 = vpop.permute.xlu0 %893
        %896 = vset.pattern.permute.xlu0 0
        %897 = vperm.xlu0 %896, %v889
        %v898 = vpop.permute.xlu0 %897
        %901 = vset.pattern.permute.xlu0 0
        %902 = vperm.xlu0 %901, %v890
        %v903 = vpop.permute.xlu0 %902
        %v908 = vunpack.c.l.b16 %v883
        %v909 = vunpack.c.l.b16 %v884
        %v910 = vunpack.c.l.b16 %v885
        %v911 = vpack.c.b16 %v909, %v908
        %v912 = vpack.c.b16 %v910, %v910
        %v914 = vsel %vm311, %v911, 0
        %v917 = vsel %vm311, %v912, 0
        %v920 = vsel %vm315, %v886, 0
        %922 = vmatprep.subr.bf16.mxu0 0
        %923 = vmatpush1.bf16.msra.mxu0 0
        %924 = vmatprep.subr.bf16.mxu0 0
        %925 = vmatpush1.bf16.msra.mxu0 0
        %926 = vmatprep.subr.bf16.mxu0 0
        %927 = vmatpush1.bf16.msra.mxu0 0
        %928 = vmatprep.subr.bf16.mxu0 0
        %929 = vmatpush1.bf16.msra.mxu0 0
        %930 = vmatprep.subr.bf16.mxu0 0
        %931 = vmatpush1.bf16.msra.mxu0 0
        %932 = vmatprep.subr.bf16.mxu0 0
        %933 = vmatpush1.bf16.msra.mxu0 0
        %934 = vmatprep.subr.bf16.mxu0 0
        %935 = vmatpush1.bf16.msra.mxu0 0
        %936 = vmatprep.subr.bf16.mxu0 0
        %937 = vmatpush1.bf16.msra.mxu0 %v920
        %938 = vmatprep.subr.bf16.mxu0 0
        %939 = vmatpush2.bf16.msra.mxu0 0
        %940 = vmatprep.subr.bf16.mxu0 0
        %941 = vmatpush2.bf16.msra.mxu0 0
        %942 = vmatprep.subr.bf16.mxu0 0
        %943 = vmatpush2.bf16.msra.mxu0 0
        %944 = vmatprep.subr.bf16.mxu0 0
        %945 = vmatpush2.bf16.msra.mxu0 0
        %946 = vmatprep.subr.bf16.mxu0 0
        %947 = vmatpush2.bf16.msra.mxu0 0
        %948 = vmatprep.subr.bf16.mxu0 0
        %949 = vmatpush2.bf16.msra.mxu0 0
        %950 = vmatprep.subr.bf16.mxu0 0
        %951 = vmatpush2.bf16.msra.mxu0 0
        %952 = vmatprep.subr.bf16.mxu0 0
        %953 = vmatpush2.bf16.msra.mxu0 0
        %954 = vmatprep.mubr.bf16.mxu0 0
        %955 = vmatmul.mubr.bf16.gmra.mxu0 %v914
        %v956 = vpop.f32.mrf.mxu0
        %v957 = vpop.f32.mrf.mxu0
        %v958 = vpop.f32.mrf.mxu0
        %v959 = vadd.f32 %v898, %v958
        %v960 = vpop.f32.mrf.mxu0
        %961 = vmatprep.mubr.bf16.mxu0 0
        %962 = vmatmul.mubr.bf16.gmra.mxu0 %v917
        %v963 = vpop.f32.mrf.mxu0
        %v964 = vadd.f32 %v903, %v963
        %v965 = vpop.f32.mrf.mxu0
        %v966 = vpop.f32.mrf.mxu0
        %v967 = vpop.f32.mrf.mxu0
        %968 = vdwg.mxu0
        %v969 = vld [vmem:[#allocation2] sm:$0xff]
        %v970 = vld [vmem:[#allocation2 + $0x8] sm:$0xff]
        %v971 = vadd.f32 %v969, %v959
        %v972 = vadd.f32 %v970, %v964
        %973 = vst.msk [vmem:[#allocation2] sm:$0xff] %vm370, %v971
        %974 = vst.msk [vmem:[#allocation2 + $0x8] sm:$0xff] %vm370, %v972
        %v975 = vld [vmem:[#allocation2] sm:$0xff]
        %v976 = vld [vmem:[#allocation2 + $0x8] sm:$0xff]
        %v977 = vmax.f32 %v975, 0.0
        %v978 = vmax.f32 %v976, 0.0
        %v979 = vld [vmem:[%s6] sm:$0xf]
        %v980 = vpack.c.bf16 %v978, %v977
        %v982 = vsel %vm370, %v979, 0
        %984 = vmatprep.subr.bf16.mxu0 0
        %985 = vmatpush1.bf16.msra.mxu0 0
        %986 = vmatprep.subr.bf16.mxu0 0
        %987 = vmatpush1.bf16.msra.mxu0 0
        %988 = vmatprep.subr.bf16.mxu0 0
        %989 = vmatpush1.bf16.msra.mxu0 0
        %990 = vmatprep.subr.bf16.mxu0 0
        %991 = vmatpush1.bf16.msra.mxu0 0
        %992 = vmatprep.subr.bf16.mxu0 0
        %993 = vmatpush1.bf16.msra.mxu0 0
        %994 = vmatprep.subr.bf16.mxu0 0
        %995 = vmatpush1.bf16.msra.mxu0 0
        %996 = vmatprep.subr.bf16.mxu0 0
        %997 = vmatpush1.bf16.msra.mxu0 0
        %998 = vmatprep.subr.bf16.mxu0 0
        %999 = vmatpush1.bf16.msra.mxu0 %v980
        %1000 = vmatprep.subr.bf16.mxu0 0
        %1001 = vmatpush2.bf16.msra.mxu0 0
        %1002 = vmatprep.subr.bf16.mxu0 0
        %1003 = vmatpush2.bf16.msra.mxu0 0
        %1004 = vmatprep.subr.bf16.mxu0 0
        %1005 = vmatpush2.bf16.msra.mxu0 0
        %1006 = vmatprep.subr.bf16.mxu0 0
        %1007 = vmatpush2.bf16.msra.mxu0 0
        %1008 = vmatprep.subr.bf16.mxu0 0
        %1009 = vmatpush2.bf16.msra.mxu0 0
        %1010 = vmatprep.subr.bf16.mxu0 0
        %1011 = vmatpush2.bf16.msra.mxu0 0
        %1012 = vmatprep.subr.bf16.mxu0 0
        %1013 = vmatpush2.bf16.msra.mxu0 0
        %1014 = vmatprep.subr.bf16.mxu0 0
        %1015 = vmatpush2.bf16.msra.mxu0 0
        %1016 = vmatprep.mubr.bf16.mxu0 0
        %1017 = vmatmul.mubr.bf16.gmra.mxu0 %v982
        %v1018 = vpop.f32.mrf.mxu0
        %v1019 = vadd.f32 0.0, %v1018
        %v1020 = vpop.f32.mrf.mxu0
        %v1021 = vpop.f32.mrf.mxu0
        %v1022 = vpop.f32.mrf.mxu0
        %1023 = vdwg.mxu0
        %v1024 = vmax.f32 %v1019, 0.0
        %v1025 = vld [vmem:[%s7] sm:$0xf]
        %v1026 = vpack.c.bf16 %v1024, %v1024
        %v1028 = vsel %vm311, %v1025, 0
        %v1031 = vsel %vm315, %v1026, 0
        %1033 = vmatprep.subr.bf16.mxu0 0
        %1034 = vmatpush1.bf16.msra.mxu0 0
        %1035 = vmatprep.subr.bf16.mxu0 0
        %1036 = vmatpush1.bf16.msra.mxu0 0
        %1037 = vmatprep.subr.bf16.mxu0 0
        %1038 = vmatpush1.bf16.msra.mxu0 0
        %1039 = vmatprep.subr.bf16.mxu0 0
        %1040 = vmatpush1.bf16.msra.mxu0 0
        %1041 = vmatprep.subr.bf16.mxu0 0
        %1042 = vmatpush1.bf16.msra.mxu0 0
        %1043 = vmatprep.subr.bf16.mxu0 0
        %1044 = vmatpush1.bf16.msra.mxu0 0
        %1045 = vmatprep.subr.bf16.mxu0 0
        %1046 = vmatpush1.bf16.msra.mxu0 0
        %1047 = vmatprep.subr.bf16.mxu0 0
        %1048 = vmatpush1.bf16.msra.mxu0 %v1031
        %1049 = vmatprep.subr.bf16.mxu0 0
        %1050 = vmatpush2.bf16.msra.mxu0 0
        %1051 = vmatprep.subr.bf16.mxu0 0
        %1052 = vmatpush2.bf16.msra.mxu0 0
        %1053 = vmatprep.subr.bf16.mxu0 0
        %1054 = vmatpush2.bf16.msra.mxu0 0
        %1055 = vmatprep.subr.bf16.mxu0 0
        %1056 = vmatpush2.bf16.msra.mxu0 0
        %1057 = vmatprep.subr.bf16.mxu0 0
        %1058 = vmatpush2.bf16.msra.mxu0 0
        %1059 = vmatprep.subr.bf16.mxu0 0
        %1060 = vmatpush2.bf16.msra.mxu0 0
        %1061 = vmatprep.subr.bf16.mxu0 0
        %1062 = vmatpush2.bf16.msra.mxu0 0
        %1063 = vmatprep.subr.bf16.mxu0 0
        %1064 = vmatpush2.bf16.msra.mxu0 0
        %1065 = vmatprep.mubr.bf16.mxu0 0
        %1066 = vmatmul.mubr.bf16.gmra.mxu0 %v1028
        %v1067 = vpop.f32.mrf.mxu0
        %v1068 = vadd.f32 0.0, %v1067
        %v1069 = vpop.f32.mrf.mxu0
        %v1070 = vpop.f32.mrf.mxu0
        %v1071 = vpop.f32.mrf.mxu0
        %1072 = vdwg.mxu0
        %v1073 = vsel %vm370, %v1068, -inf
        %v1074 = vrot.slane %v1073, 4
        %v1075 = vmax.f32 %v1073, %v1074
        %v1076 = vrot.slane %v1075, 2
        %v1077 = vmax.f32 %v1075, %v1076
        %v1078 = vrot.slane %v1077, 1
        %v1079 = vmax.f32 %v1077, %v1078
        %v1080 = vsub.f32 %v1068, %v1079
        %v1081 = vmul.f32 %v1080, 1.442695
        %v1082 = vpow.pop %v1081
        %v1083 = vsel %vm370, %v1082, 0.0
        %v1084 = vrot.slane %v1083, 4
        %v1085 = vadd.f32 %v1083, %v1084
        %v1086 = vrot.slane %v1085, 2
        %v1087 = vadd.f32 %v1085, %v1086
        %v1088 = vrot.slane %v1087, 1
        %v1089 = vadd.f32 %v1087, %v1088
        %v1090 = vrcp.pop %v1089
        %v1091 = vmul.f32 %v1082, %v1090
        %1092 = vst.msk [vmem:[%s294] sm:$0xff] %vm370, %v1091
        %s1093 = sand.u32 %s203, 1
        %s1094 = scalar_lea.sflag [#allocation4], %s1093
        %s1095 = sand.u32 %s203, 1
        %s1096 = smul.addr %s1095, 8
        %s1097 = scalar_lea.vmem [#allocation3], %s1096
        // Predicated region
        $region53: #{tpu_custom_call.1} parent=51 // pred_check
          %p1098 = pneg %p213
        $region54: #{tpu_custom_call.1} parent=51 // pred_check_branch
          %1100 = sbr.rel (%p1098) target = $region56
        $region55: #{tpu_custom_call.1} parent=51 // pred_region
          %s1102 = ssub.s32 128, 128
          %1103 = vsyncadd %s1094, %s1102
          %s1104 = smul.addr %s22, 128
          %s1105 = scalar_lea.hbm %s8, %s1104
          %s1107 = sshll.u32 %s1097, 4
          %s1108 = int_to_ptr.vmem [resolvable:$true] %s1107
          %1110 = dma.vmem_to_hbm [thread:$0]  %s1108, 128, %s1105, %s1094
        $region56: #{tpu_custom_call.1} parent=51 // pred_fallthru
          _
      $region52: #{tpu_custom_call.1} parent=5 // pred_fallthru
        _
      %p1111 = scmp.le.s32.totalorder 2, %s17
      // Predicated region
      $region57: #{tpu_custom_call.1} parent=5 // pred_check
        %p1112 = pneg %p1111
      $region58: #{tpu_custom_call.1} parent=5 // pred_check_branch
        %1114 = sbr.rel (%p1112) target = $region60
      $region59: #{tpu_custom_call.1} parent=5 // pred_region
        %s1115 = ssub.s32 %s17, 2
        // Predicated region
        $region61: #{tpu_custom_call.1} parent=59 // pred_check
          %p1116 = pneg %p219
        $region62: #{tpu_custom_call.1} parent=59 // pred_check_branch
          %1118 = sbr.rel (%p1116) target = $region64
        $region63: #{tpu_custom_call.1} parent=59 // pred_region
          %s1119 = sand.u32 %s204, 1
          %s1120 = scalar_lea.sflag [#allocation4], %s1119
          %s1121 = sand.u32 %s204, 1
          %s1122 = smul.addr %s1121, 8
          %s1123 = scalar_lea.vmem [#allocation3], %s1122
          %1124 = dma.done %s1120, 128
        $region64: #{tpu_custom_call.1} parent=59 // pred_fallthru
          _
      $region60: #{tpu_custom_call.1} parent=5 // pred_fallthru
        _
    $region6: #{tpu_custom_call.1} parent=1 // loop_footer
      %s21 = sadd.s32 1, %s17
    $region7: #{tpu_custom_call.1} parent=1 // loop_footer_branch
      %16 = sbr.rel target = $region3
    $region8: #{tpu_custom_call.1} parent=1 // loop_exit
      _
    %1125 = vsyncpa [#allocation4], 1
    %s1126 = scalar_lea.sflag [#allocation4], 1
    %1127 = vsyncpa %s1126, 1

</llo_original>
